<compile_context>
chip_gen: v5e
topology: v5e:2x2
jax: 0.10.0
libtpu: 0.0.40
codegen_flags: <defaults>
</compile_context>

<pallas_src>
import numpy as np
import jax
import jax.numpy as jnp
from jax.experimental import pallas as pl
from jax.experimental.pallas import tpu as pltpu

FEATURE_DIM = 64     # CFG.feature_dim
HIDDEN_DIM = 128     # CFG.hidden_dim
LN_EPS = 1e-5        # nn.LayerNorm default eps


def _layer_norm(h, gamma, beta):
    # Single-pass stats: var = E[x^2] - E[x]^2 (biased, matches nn.LayerNorm).
    m = jnp.mean(h, axis=-1, keepdims=True)
    m2 = jnp.mean(h * h, axis=-1, keepdims=True)
    var = m2 - m * m
    return (h - m) * jax.lax.rsqrt(var + LN_EPS) * gamma + beta


# ----------------------------------------------------------------------------
# Kernel: one antigen graph per grid step, all genes unrolled inside.
# ----------------------------------------------------------------------------
def bcell_kernel(x_ref, a_ref, vecs_ref, w1_ref, w2_ref, wi1_ref, wi2_ref, wa1_ref,
                 affinity_ref, combined_ref):
    G, H, _ = w2_ref.shape
    GH = G * H

    x = x_ref[...]                      # (N, F)  f32
    a = a_ref[...]                      # (N, N)  f32
    vecs = vecs_ref[...]                # (9, W)  f32 packed vectors

    b1, g1, be1 = vecs[0:1, :GH], vecs[1:2, :GH], vecs[2:3, :GH]
    b2, g2, be2 = vecs[3:4, :GH], vecs[4:5, :GH], vecs[5:6, :GH]
    bi1 = vecs[6:7, :2 * H]
    bi2, gi, bei = vecs[7:8, :H], vecs[7:8, H:2 * H], vecs[7:8, 2 * H:3 * H]
    ba1, wa2 = vecs[8:9, :H], vecs[8:9, H:2 * H]
    ba2 = vecs[8:9, 2 * H:2 * H + 1]

    # ---- GCN layer 1, all genes batched on the lane axis: (A @ X) @ W1_all + b1
    ax = jnp.dot(a, x, preferred_element_type=jnp.float32)                    # (N, F)
    h1 = jnp.dot(ax.astype(jnp.bfloat16), w1_ref[...],
                 preferred_element_type=jnp.float32) + b1                     # (N, G*H)

    # ---- per-gene tail (static unrolled loop, no lane concats) ----
    pooled = jnp.zeros((1, H), jnp.float32)
    for g in range(G):
        sl = slice(g * H, (g + 1) * H)
        hg = _layer_norm(h1[:, sl], g1[:, sl], be1[:, sl])                    # norm1
        hg = jnp.maximum(hg, 0.0)                                             # ReLU
        # conv2:  A @ (relu @ W2) == (A @ relu) @ W2  (aggregate first, narrow)
        qg = jnp.dot(a, hg, preferred_element_type=jnp.float32)               # (N, H)
        hg = jnp.dot(qg.astype(jnp.bfloat16), w2_ref[g],
                     preferred_element_type=jnp.float32) + b2[:, sl]          # (N, H)
        # norm2 with sign (inversion), position weight and 1/G folded into affine
        hg = _layer_norm(hg, g2[:, sl], be2[:, sl])
        pooled = pooled + jnp.mean(hg, axis=0, keepdims=True)                 # node-mean pool

    # ---- gene_integrator: Linear -> ReLU -> (Dropout) -> Linear -> LayerNorm ----
    z = jnp.dot(pooled.astype(jnp.bfloat16), wi1_ref[...],
                preferred_element_type=jnp.float32) + bi1
    z = jnp.maximum(z, 0.0)
    # TODO(synk): nn.Dropout(0.1) is identity in eval mode; training-mode dropout not implemented.
    z = jnp.dot(z.astype(jnp.bfloat16), wi2_ref[...],
                preferred_element_type=jnp.float32) + bi2
    combined = _layer_norm(z, gi, bei)                                        # (1, H)
    combined_ref[...] = combined

    # ---- affinity_head: Linear -> ReLU -> (w.x + b) -> Sigmoid ----
    af = jnp.dot(combined.astype(jnp.bfloat16), wa1_ref[...],
                 preferred_element_type=jnp.float32) + ba1
    af = jnp.maximum(af, 0.0)
    logit = jnp.sum(af * wa2, axis=-1, keepdims=True) + ba2                   # (1, 1)
    affinity_ref[...] = jax.nn.sigmoid(logit)


# ----------------------------------------------------------------------------
# One-time host-side parameter folding / packing (hoisted out of the call path)
# ----------------------------------------------------------------------------
def prepare_params(params):
    G, F, H = params["w1"].shape
    GH = G * H
    W = max(GH, 3 * H, 2 * H + 1)
    W = ((W + 127) // 128) * 128                 # lane-align the packed slab

    # Fold inversion sign, position weight and the 1/G gene-mean into norm2's affine.
    coef = (params["sign"] * params["posw"] / G)[:, None, None]               # (G,1,1)

    def lane_stack(p):                            # (G,1,H) -> (1, G*H) on lanes
        return jnp.transpose(p, (1, 0, 2)).reshape(1, GH)

    def row(v):                                   # pad (1,k) -> (1,W)
        return jnp.pad(v, ((0, 0), (0, W - v.shape[1])))

    rows = [
        row(lane_stack(params["b1"])),
        row(lane_stack(params["g1"])),
        row(lane_stack(params["be1"])),
        row(lane_stack(params["b2"])),
        row(lane_stack(params["g2"] * coef)),
        row(lane_stack(params["be2"] * coef)),
        row(params["bi1"]),
        row(jnp.concatenate([params["bi2"], params["gi"], params["bei"]], axis=1)),
        row(jnp.concatenate([params["ba1"], params["wa2"].reshape(1, H),
                             params["ba2"]], axis=1)),
    ]
    vecs = jnp.concatenate(rows, axis=0).astype(jnp.float32)                  # (9, W)

    return {
        "vecs": vecs,
        "w1_all": jnp.transpose(params["w1"], (1, 0, 2)).reshape(F, GH).astype(jnp.bfloat16),
        "w2":  params["w2"].astype(jnp.bfloat16),
        "wi1": params["wi1"].astype(jnp.bfloat16),
        "wi2": params["wi2"].astype(jnp.bfloat16),
        "wa1": params["wa1"].astype(jnp.bfloat16),
    }


def transposable_bcell_forward(x, a_hat, prepped):
    """Batched multi-gene TransposableBCell.forward. Returns (affinity (B,1), combined (B,H))."""
    B, N, F = x.shape
    G, H, _ = prepped["w2"].shape

    in_specs = [
        pl.BlockSpec((None, N, F), lambda b: (b, 0, 0)),          # x        : per-graph block
        pl.BlockSpec((None, N, N), lambda b: (b, 0, 0)),          # a_hat    : per-graph block
        pl.BlockSpec(prepped["vecs"].shape,   lambda b: (0, 0)),  # weights  : VMEM-resident
        pl.BlockSpec(prepped["w1_all"].shape, lambda b: (0, 0)),
        pl.BlockSpec(prepped["w2"].shape,     lambda b: (0, 0, 0)),
        pl.BlockSpec(prepped["wi1"].shape,    lambda b: (0, 0)),
        pl.BlockSpec(prepped["wi2"].shape,    lambda b: (0, 0)),
        pl.BlockSpec(prepped["wa1"].shape,    lambda b: (0, 0)),
    ]
    out_specs = (
        pl.BlockSpec((None, 1, 1), lambda b: (b, 0, 0)),
        pl.BlockSpec((None, 1, H), lambda b: (b, 0, 0)),
    )
    fn = pl.pallas_call(
        bcell_kernel,
        grid=(B,),
        in_specs=in_specs,
        out_specs=out_specs,
        out_shape=(jax.ShapeDtypeStruct((B, 1, 1), jnp.float32),
                   jax.ShapeDtypeStruct((B, 1, H), jnp.float32)),
        compiler_params=pltpu.CompilerParams(dimension_semantics=("parallel",)),
    )
    aff, comb = fn(x, a_hat, prepped["vecs"], prepped["w1_all"], prepped["w2"],
                   prepped["wi1"], prepped["wi2"], prepped["wa1"])
    return aff.reshape(B, 1), comb.reshape(B, H)


# ----------------------------------------------------------------------------
# Utilities / reference
# ----------------------------------------------------------------------------
def build_gcn_adj(edge_index, num_nodes):
    """Dense D^-1/2 (A + I) D^-1/2 matching torch_geometric GCNConv's gcn_norm."""
    src = jnp.concatenate([edge_index[0], jnp.arange(num_nodes)])
    dst = jnp.concatenate([edge_index[1], jnp.arange(num_nodes)])
    w = jnp.ones(src.shape[0], jnp.float32)
    deg = jnp.zeros((num_nodes,), jnp.float32).at[dst].add(w)
    dinv = jnp.where(deg > 0, 1.0 / jnp.sqrt(deg), 0.0)
    vals = dinv[src] * dinv[dst]
    return jnp.zeros((num_nodes, num_nodes), jnp.float32).at[dst, src].add(vals)


def _reference_single(x, a_hat, params):
    G = params["w1"].shape[0]
    outs = []
    for g in range(G):
        h = a_hat @ (x @ params["w1"][g]) + params["b1"][g, 0]
        h = _layer_norm(h, params["g1"][g, 0], params["be1"][g, 0])
        h = jnp.maximum(h, 0.0)
        h = a_hat @ (h @ params["w2"][g]) + params["b2"][g, 0]
        h = _layer_norm(h, params["g2"][g, 0], params["be2"][g, 0])
        out = jnp.mean(h * params["sign"][g], axis=0, keepdims=True) * params["posw"][g]
        outs.append(out)
    mean_out = jnp.mean(jnp.concatenate(outs, axis=0), axis=0, keepdims=True)
    z = jnp.maximum(mean_out @ params["wi1"] + params["bi1"], 0.0)
    z = z @ params["wi2"] + params["bi2"]
    combined = _layer_norm(z, params["gi"], params["bei"])
    af = jnp.maximum(combined @ params["wa1"] + params["ba1"], 0.0)
    af = af @ params["wa2"] + params["ba2"]
    return jax.nn.sigmoid(af), combined


def reference_forward(x, a_hat, params):
    aff, comb = jax.vmap(lambda xb, ab: _reference_single(xb, ab, params))(x, a_hat)
    return aff.reshape(x.shape[0], 1), comb.reshape(x.shape[0], -1)


if __name__ == "__main__":
    B, N, F, H, G = 4, 8, FEATURE_DIM, HIDDEN_DIM, 3   # 4 antigen graphs, 8 nodes, 3 active genes

    key = jax.random.PRNGKey(0)
    keys = jax.random.split(key, 20)

    x = jax.random.normal(keys[0], (B, N, F), jnp.float32)

    # per-graph topology: undirected ring + one distinct chord per graph
    a_list = []
    for i in range(B):
        s = np.arange(N)
        d = (np.arange(N) + 1) % N
        c = (2 + i) % N
        src = np.concatenate([s, d, [0, c]])
        dst = np.concatenate([d, s, [c, 0]])
        edge_index = jnp.asarray(np.stack([src, dst]), dtype=jnp.int32)
        a_list.append(build_gcn_adj(edge_index, N))
    a_hat = jnp.stack(a_list)                                                # (B, N, N)

    def init(k, shape, scale=0.1):
        return jax.random.normal(k, shape, jnp.float32) * scale

    params = {
        # per-gene GCNConv / LayerNorm params (gene axis first)
        "w1":  init(keys[1], (G, F, H)),
        "b1":  init(keys[2], (G, 1, H), 0.05),
        "g1":  jnp.ones((G, 1, H), jnp.float32) + init(keys[3], (G, 1, H), 0.02),
        "be1": init(keys[4], (G, 1, H), 0.02),
        "w2":  init(keys[5], (G, H, H)),
        "b2":  init(keys[6], (G, 1, H), 0.05),
        "g2":  jnp.ones((G, 1, H), jnp.float32) + init(keys[7], (G, 1, H), 0.02),
        "be2": init(keys[8], (G, 1, H), 0.02),
        # gene_integrator: Linear(H,2H) -> ReLU -> Dropout -> Linear(2H,H) -> LayerNorm(H)
        "wi1": init(keys[9], (H, 2 * H)),
        "bi1": init(keys[10], (1, 2 * H), 0.05),
        "wi2": init(keys[11], (2 * H, H)),
        "bi2": init(keys[12], (1, H), 0.05),
        "gi":  jnp.ones((1, H), jnp.float32),
        "bei": jnp.zeros((1, H), jnp.float32),
        # affinity_head: Linear(H,H) -> ReLU -> Linear(H,1) -> Sigmoid
        "wa1": init(keys[13], (H, H)),
        "ba1": init(keys[14], (1, H), 0.05),
        "wa2": init(keys[15], (H, 1)),
        "ba2": init(keys[16], (1, 1), 0.05),
    }

    # genes sorted by position (as in forward); one inverted gene
    positions = np.sort(np.asarray(jax.random.uniform(keys[17], (G,), jnp.float32)))
    inverted = np.array([False, True, False])
    params["sign"] = jnp.asarray(np.where(inverted, -1.0, 1.0), jnp.float32)
    params["posw"] = jnp.asarray(1.0 - positions * 0.3, jnp.float32)

    prepped = prepare_params(params)          # one-time folding / packing / bf16 cast
    forward = jax.jit(transposable_bcell_forward)

    affinity, combined = jax.block_until_ready(forward(x, a_hat, prepped))

    ref_aff, ref_comb = reference_forward(x, a_hat, params)
    # Tolerance relaxed vs. the pure-f32 version because matmul weights are bf16.
    np.testing.assert_allclose(np.asarray(affinity), np.asarray(ref_aff),
                               rtol=2e-2, atol=2e-2)
    np.testing.assert_allclose(np.asarray(combined), np.asarray(ref_comb),
                               rtol=2e-2, atol=2e-2)

    assert affinity.shape == (B, 1) and combined.shape == (B, HIDDEN_DIM)
    print("KERNEL_OK")
</pallas_src>

<mosaic_0001>
module attributes {stable_mosaic.version = 11 : i64} {
  func.func @bcell_kernel(%arg0: i32, %arg1: memref<1x8x64xf32, #tpu.memory_space<vmem>>, %arg2: memref<1x8x8xf32, #tpu.memory_space<vmem>>, %arg3: memref<9x384xf32, #tpu.memory_space<vmem>>, %arg4: memref<64x384xbf16, #tpu.memory_space<vmem>>, %arg5: memref<3x128x128xbf16, #tpu.memory_space<vmem>>, %arg6: memref<128x256xbf16, #tpu.memory_space<vmem>>, %arg7: memref<256x128xbf16, #tpu.memory_space<vmem>>, %arg8: memref<128x128xbf16, #tpu.memory_space<vmem>>, %arg9: memref<1x1x1xf32, #tpu.memory_space<vmem>>, %arg10: memref<1x1x128xf32, #tpu.memory_space<vmem>>) attributes {dimension_semantics = [#tpu.dimension_semantics<parallel>], iteration_bounds = array<i64: 4>, scalar_prefetch = 0 : i64, scratch_operands = 0 : i64, tpu.core_type = #tpu.core_type<tc>, window_params = [{transform_indices = @transform_0, window_bounds = array<i64: 1, 8, 64>}, {transform_indices = @transform_1, window_bounds = array<i64: 1, 8, 8>}, {pipeline_mode = #tpu.pipeline_mode<synchronous>, transform_indices = @transform_2, window_bounds = array<i64: 9, 384>}, {pipeline_mode = #tpu.pipeline_mode<synchronous>, transform_indices = @transform_3, window_bounds = array<i64: 64, 384>}, {pipeline_mode = #tpu.pipeline_mode<synchronous>, transform_indices = @transform_4, window_bounds = array<i64: 3, 128, 128>}, {pipeline_mode = #tpu.pipeline_mode<synchronous>, transform_indices = @transform_5, window_bounds = array<i64: 128, 256>}, {pipeline_mode = #tpu.pipeline_mode<synchronous>, transform_indices = @transform_6, window_bounds = array<i64: 256, 128>}, {pipeline_mode = #tpu.pipeline_mode<synchronous>, transform_indices = @transform_7, window_bounds = array<i64: 128, 128>}, {transform_indices = @transform_8, window_bounds = array<i64: 1, 1, 1>}, {transform_indices = @transform_9, window_bounds = array<i64: 1, 1, 128>}]} {
    %c0 = arith.constant 0 : index
    %c0_0 = arith.constant 0 : index
    %c0_1 = arith.constant 0 : index
    %0 = vector.load %arg1[%c0, %c0_0, %c0_1] : memref<1x8x64xf32, #tpu.memory_space<vmem>>, vector<1x8x64xf32>
    %1 = vector.shape_cast %0 : vector<1x8x64xf32> to vector<8x64xf32>
    %c0_2 = arith.constant 0 : index
    %c0_3 = arith.constant 0 : index
    %c0_4 = arith.constant 0 : index
    %2 = vector.load %arg2[%c0_2, %c0_3, %c0_4] : memref<1x8x8xf32, #tpu.memory_space<vmem>>, vector<1x8x8xf32>
    %3 = vector.shape_cast %2 : vector<1x8x8xf32> to vector<8x8xf32>
    %c0_5 = arith.constant 0 : index
    %c0_6 = arith.constant 0 : index
    %4 = vector.load %arg3[%c0_5, %c0_6] : memref<9x384xf32, #tpu.memory_space<vmem>>, vector<9x384xf32>
    %5 = vector.extract_strided_slice %4 {offsets = [0, 0], sizes = [1, 384], strides = [1, 1]} : vector<9x384xf32> to vector<1x384xf32>
    %6 = vector.extract_strided_slice %4 {offsets = [1, 0], sizes = [1, 384], strides = [1, 1]} : vector<9x384xf32> to vector<1x384xf32>
    %7 = vector.extract_strided_slice %4 {offsets = [2, 0], sizes = [1, 384], strides = [1, 1]} : vector<9x384xf32> to vector<1x384xf32>
    %8 = vector.extract_strided_slice %4 {offsets = [3, 0], sizes = [1, 384], strides = [1, 1]} : vector<9x384xf32> to vector<1x384xf32>
    %9 = vector.extract_strided_slice %4 {offsets = [4, 0], sizes = [1, 384], strides = [1, 1]} : vector<9x384xf32> to vector<1x384xf32>
    %10 = vector.extract_strided_slice %4 {offsets = [5, 0], sizes = [1, 384], strides = [1, 1]} : vector<9x384xf32> to vector<1x384xf32>
    %11 = vector.extract_strided_slice %4 {offsets = [6, 0], sizes = [1, 256], strides = [1, 1]} : vector<9x384xf32> to vector<1x256xf32>
    %12 = vector.extract_strided_slice %4 {offsets = [7, 0], sizes = [1, 128], strides = [1, 1]} : vector<9x384xf32> to vector<1x128xf32>
    %13 = vector.extract_strided_slice %4 {offsets = [7, 128], sizes = [1, 128], strides = [1, 1]} : vector<9x384xf32> to vector<1x128xf32>
    %14 = vector.extract_strided_slice %4 {offsets = [7, 256], sizes = [1, 128], strides = [1, 1]} : vector<9x384xf32> to vector<1x128xf32>
    %15 = vector.extract_strided_slice %4 {offsets = [8, 0], sizes = [1, 128], strides = [1, 1]} : vector<9x384xf32> to vector<1x128xf32>
    %16 = vector.extract_strided_slice %4 {offsets = [8, 128], sizes = [1, 128], strides = [1, 1]} : vector<9x384xf32> to vector<1x128xf32>
    %17 = vector.extract_strided_slice %4 {offsets = [8, 256], sizes = [1, 1], strides = [1, 1]} : vector<9x384xf32> to vector<1x1xf32>
    %cst = arith.constant dense<0.000000e+00> : vector<8x64xf32>
    %18 = tpu.matmul %3, %1, %cst {dimension_numbers = #tpu.dot_dimension_numbers<[1], [0], [0], [1], [0, 0, 1, 1], [], []>} : vector<8x8xf32>, vector<8x64xf32>, vector<8x64xf32> -> vector<8x64xf32>
    %19 = arith.truncf %18 : vector<8x64xf32> to vector<8x64xbf16>
    %c0_7 = arith.constant 0 : index
    %c0_8 = arith.constant 0 : index
    %20 = vector.load %arg4[%c0_7, %c0_8] : memref<64x384xbf16, #tpu.memory_space<vmem>>, vector<64x384xbf16>
    %cst_9 = arith.constant dense<0.000000e+00> : vector<8x384xf32>
    %21 = tpu.matmul %19, %20, %cst_9 {dimension_numbers = #tpu.dot_dimension_numbers<[1], [0], [0], [1], [0, 0, 1, 1], [], []>} : vector<8x64xbf16>, vector<64x384xbf16>, vector<8x384xf32> -> vector<8x384xf32>
    %22 = vector.broadcast %5 : vector<1x384xf32> to vector<8x384xf32>
    %23 = arith.addf %21, %22 : vector<8x384xf32>
    %cst_10 = arith.constant 0.000000e+00 : f32
    %24 = vector.broadcast %cst_10 : f32 to vector<1x128xf32>
    %25 = vector.extract_strided_slice %23 {offsets = [0, 0], sizes = [8, 128], strides = [1, 1]} : vector<8x384xf32> to vector<8x128xf32>
    %26 = vector.extract_strided_slice %6 {offsets = [0, 0], sizes = [1, 128], strides = [1, 1]} : vector<1x384xf32> to vector<1x128xf32>
    %27 = vector.extract_strided_slice %7 {offsets = [0, 0], sizes = [1, 128], strides = [1, 1]} : vector<1x384xf32> to vector<1x128xf32>
    %cst_11 = arith.constant dense<0.000000e+00> : vector<8xf32>
    %28 = vector.multi_reduction <add>, %25, %cst_11 [1] : vector<8x128xf32> to vector<8xf32>
    %29 = vector.shape_cast %28 : vector<8xf32> to vector<8x1xf32>
    %cst_12 = arith.constant 1.280000e+02 : f32
    %30 = vector.broadcast %cst_12 : f32 to vector<8x1xf32>
    %31 = arith.divf %29, %30 : vector<8x1xf32>
    %32 = arith.mulf %25, %25 : vector<8x128xf32>
    %cst_13 = arith.constant dense<0.000000e+00> : vector<8xf32>
    %33 = vector.multi_reduction <add>, %32, %cst_13 [1] : vector<8x128xf32> to vector<8xf32>
    %34 = vector.shape_cast %33 : vector<8xf32> to vector<8x1xf32>
    %cst_14 = arith.constant 1.280000e+02 : f32
    %35 = vector.broadcast %cst_14 : f32 to vector<8x1xf32>
    %36 = arith.divf %34, %35 : vector<8x1xf32>
    %37 = arith.mulf %31, %31 : vector<8x1xf32>
    %38 = arith.subf %36, %37 : vector<8x1xf32>
    %39 = vector.broadcast %31 : vector<8x1xf32> to vector<8x128xf32>
    %40 = arith.subf %25, %39 : vector<8x128xf32>
    %cst_15 = arith.constant 9.99999974E-6 : f32
    %41 = vector.broadcast %cst_15 : f32 to vector<8x1xf32>
    %42 = arith.addf %38, %41 : vector<8x1xf32>
    %43 = math.rsqrt %42 : vector<8x1xf32>
    %44 = vector.broadcast %43 : vector<8x1xf32> to vector<8x128xf32>
    %45 = arith.mulf %40, %44 : vector<8x128xf32>
    %46 = vector.broadcast %26 : vector<1x128xf32> to vector<8x128xf32>
    %47 = arith.mulf %45, %46 : vector<8x128xf32>
    %48 = vector.broadcast %27 : vector<1x128xf32> to vector<8x128xf32>
    %49 = arith.addf %47, %48 : vector<8x128xf32>
    %cst_16 = arith.constant 0.000000e+00 : f32
    %50 = vector.broadcast %cst_16 : f32 to vector<8x128xf32>
    %51 = arith.maximumf %49, %50 : vector<8x128xf32>
    %cst_17 = arith.constant dense<0.000000e+00> : vector<8x128xf32>
    %52 = tpu.matmul %3, %51, %cst_17 {dimension_numbers = #tpu.dot_dimension_numbers<[1], [0], [0], [1], [0, 0, 1, 1], [], []>} : vector<8x8xf32>, vector<8x128xf32>, vector<8x128xf32> -> vector<8x128xf32>
    %53 = arith.truncf %52 : vector<8x128xf32> to vector<8x128xbf16>
    %c0_18 = arith.constant 0 : index
    %c0_19 = arith.constant 0 : index
    %c0_20 = arith.constant 0 : index
    %54 = vector.load %arg5[%c0_18, %c0_19, %c0_20] : memref<3x128x128xbf16, #tpu.memory_space<vmem>>, vector<1x128x128xbf16>
    %55 = vector.shape_cast %54 : vector<1x128x128xbf16> to vector<128x128xbf16>
    %cst_21 = arith.constant dense<0.000000e+00> : vector<8x128xf32>
    %56 = tpu.matmul %53, %55, %cst_21 {dimension_numbers = #tpu.dot_dimension_numbers<[1], [0], [0], [1], [0, 0, 1, 1], [], []>} : vector<8x128xbf16>, vector<128x128xbf16>, vector<8x128xf32> -> vector<8x128xf32>
    %57 = vector.extract_strided_slice %8 {offsets = [0, 0], sizes = [1, 128], strides = [1, 1]} : vector<1x384xf32> to vector<1x128xf32>
    %58 = vector.broadcast %57 : vector<1x128xf32> to vector<8x128xf32>
    %59 = arith.addf %56, %58 : vector<8x128xf32>
    %60 = vector.extract_strided_slice %9 {offsets = [0, 0], sizes = [1, 128], strides = [1, 1]} : vector<1x384xf32> to vector<1x128xf32>
    %61 = vector.extract_strided_slice %10 {offsets = [0, 0], sizes = [1, 128], strides = [1, 1]} : vector<1x384xf32> to vector<1x128xf32>
    %cst_22 = arith.constant dense<0.000000e+00> : vector<8xf32>
    %62 = vector.multi_reduction <add>, %59, %cst_22 [1] : vector<8x128xf32> to vector<8xf32>
    %63 = vector.shape_cast %62 : vector<8xf32> to vector<8x1xf32>
    %cst_23 = arith.constant 1.280000e+02 : f32
    %64 = vector.broadcast %cst_23 : f32 to vector<8x1xf32>
    %65 = arith.divf %63, %64 : vector<8x1xf32>
    %66 = arith.mulf %59, %59 : vector<8x128xf32>
    %cst_24 = arith.constant dense<0.000000e+00> : vector<8xf32>
    %67 = vector.multi_reduction <add>, %66, %cst_24 [1] : vector<8x128xf32> to vector<8xf32>
    %68 = vector.shape_cast %67 : vector<8xf32> to vector<8x1xf32>
    %cst_25 = arith.constant 1.280000e+02 : f32
    %69 = vector.broadcast %cst_25 : f32 to vector<8x1xf32>
    %70 = arith.divf %68, %69 : vector<8x1xf32>
    %71 = arith.mulf %65, %65 : vector<8x1xf32>
    %72 = arith.subf %70, %71 : vector<8x1xf32>
    %73 = vector.broadcast %65 : vector<8x1xf32> to vector<8x128xf32>
    %74 = arith.subf %59, %73 : vector<8x128xf32>
    %cst_26 = arith.constant 9.99999974E-6 : f32
    %75 = vector.broadcast %cst_26 : f32 to vector<8x1xf32>
    %76 = arith.addf %72, %75 : vector<8x1xf32>
    %77 = math.rsqrt %76 : vector<8x1xf32>
    %78 = vector.broadcast %77 : vector<8x1xf32> to vector<8x128xf32>
    %79 = arith.mulf %74, %78 : vector<8x128xf32>
    %80 = vector.broadcast %60 : vector<1x128xf32> to vector<8x128xf32>
    %81 = arith.mulf %79, %80 : vector<8x128xf32>
    %82 = vector.broadcast %61 : vector<1x128xf32> to vector<8x128xf32>
    %83 = arith.addf %81, %82 : vector<8x128xf32>
    %cst_27 = arith.constant dense<0.000000e+00> : vector<128xf32>
    %84 = vector.multi_reduction <add>, %83, %cst_27 [0] : vector<8x128xf32> to vector<128xf32>
    %85 = vector.shape_cast %84 : vector<128xf32> to vector<1x128xf32>
    %cst_28 = arith.constant 8.000000e+00 : f32
    %86 = vector.broadcast %cst_28 : f32 to vector<1x128xf32>
    %87 = arith.divf %85, %86 : vector<1x128xf32>
    %88 = arith.addf %24, %87 : vector<1x128xf32>
    %89 = vector.extract_strided_slice %23 {offsets = [0, 128], sizes = [8, 128], strides = [1, 1]} : vector<8x384xf32> to vector<8x128xf32>
    %90 = vector.extract_strided_slice %6 {offsets = [0, 128], sizes = [1, 128], strides = [1, 1]} : vector<1x384xf32> to vector<1x128xf32>
    %91 = vector.extract_strided_slice %7 {offsets = [0, 128], sizes = [1, 128], strides = [1, 1]} : vector<1x384xf32> to vector<1x128xf32>
    %cst_29 = arith.constant dense<0.000000e+00> : vector<8xf32>
    %92 = vector.multi_reduction <add>, %89, %cst_29 [1] : vector<8x128xf32> to vector<8xf32>
    %93 = vector.shape_cast %92 : vector<8xf32> to vector<8x1xf32>
    %cst_30 = arith.constant 1.280000e+02 : f32
    %94 = vector.broadcast %cst_30 : f32 to vector<8x1xf32>
    %95 = arith.divf %93, %94 : vector<8x1xf32>
    %96 = arith.mulf %89, %89 : vector<8x128xf32>
    %cst_31 = arith.constant dense<0.000000e+00> : vector<8xf32>
    %97 = vector.multi_reduction <add>, %96, %cst_31 [1] : vector<8x128xf32> to vector<8xf32>
    %98 = vector.shape_cast %97 : vector<8xf32> to vector<8x1xf32>
    %cst_32 = arith.constant 1.280000e+02 : f32
    %99 = vector.broadcast %cst_32 : f32 to vector<8x1xf32>
    %100 = arith.divf %98, %99 : vector<8x1xf32>
    %101 = arith.mulf %95, %95 : vector<8x1xf32>
    %102 = arith.subf %100, %101 : vector<8x1xf32>
    %103 = vector.broadcast %95 : vector<8x1xf32> to vector<8x128xf32>
    %104 = arith.subf %89, %103 : vector<8x128xf32>
    %cst_33 = arith.constant 9.99999974E-6 : f32
    %105 = vector.broadcast %cst_33 : f32 to vector<8x1xf32>
    %106 = arith.addf %102, %105 : vector<8x1xf32>
    %107 = math.rsqrt %106 : vector<8x1xf32>
    %108 = vector.broadcast %107 : vector<8x1xf32> to vector<8x128xf32>
    %109 = arith.mulf %104, %108 : vector<8x128xf32>
    %110 = vector.broadcast %90 : vector<1x128xf32> to vector<8x128xf32>
    %111 = arith.mulf %109, %110 : vector<8x128xf32>
    %112 = vector.broadcast %91 : vector<1x128xf32> to vector<8x128xf32>
    %113 = arith.addf %111, %112 : vector<8x128xf32>
    %cst_34 = arith.constant 0.000000e+00 : f32
    %114 = vector.broadcast %cst_34 : f32 to vector<8x128xf32>
    %115 = arith.maximumf %113, %114 : vector<8x128xf32>
    %cst_35 = arith.constant dense<0.000000e+00> : vector<8x128xf32>
    %116 = tpu.matmul %3, %115, %cst_35 {dimension_numbers = #tpu.dot_dimension_numbers<[1], [0], [0], [1], [0, 0, 1, 1], [], []>} : vector<8x8xf32>, vector<8x128xf32>, vector<8x128xf32> -> vector<8x128xf32>
    %117 = arith.truncf %116 : vector<8x128xf32> to vector<8x128xbf16>
    %c1 = arith.constant 1 : index
    %c0_36 = arith.constant 0 : index
    %c0_37 = arith.constant 0 : index
    %118 = vector.load %arg5[%c1, %c0_36, %c0_37] : memref<3x128x128xbf16, #tpu.memory_space<vmem>>, vector<1x128x128xbf16>
    %119 = vector.shape_cast %118 : vector<1x128x128xbf16> to vector<128x128xbf16>
    %cst_38 = arith.constant dense<0.000000e+00> : vector<8x128xf32>
    %120 = tpu.matmul %117, %119, %cst_38 {dimension_numbers = #tpu.dot_dimension_numbers<[1], [0], [0], [1], [0, 0, 1, 1], [], []>} : vector<8x128xbf16>, vector<128x128xbf16>, vector<8x128xf32> -> vector<8x128xf32>
    %121 = vector.extract_strided_slice %8 {offsets = [0, 128], sizes = [1, 128], strides = [1, 1]} : vector<1x384xf32> to vector<1x128xf32>
    %122 = vector.broadcast %121 : vector<1x128xf32> to vector<8x128xf32>
    %123 = arith.addf %120, %122 : vector<8x128xf32>
    %124 = vector.extract_strided_slice %9 {offsets = [0, 128], sizes = [1, 128], strides = [1, 1]} : vector<1x384xf32> to vector<1x128xf32>
    %125 = vector.extract_strided_slice %10 {offsets = [0, 128], sizes = [1, 128], strides = [1, 1]} : vector<1x384xf32> to vector<1x128xf32>
    %cst_39 = arith.constant dense<0.000000e+00> : vector<8xf32>
    %126 = vector.multi_reduction <add>, %123, %cst_39 [1] : vector<8x128xf32> to vector<8xf32>
    %127 = vector.shape_cast %126 : vector<8xf32> to vector<8x1xf32>
    %cst_40 = arith.constant 1.280000e+02 : f32
    %128 = vector.broadcast %cst_40 : f32 to vector<8x1xf32>
    %129 = arith.divf %127, %128 : vector<8x1xf32>
    %130 = arith.mulf %123, %123 : vector<8x128xf32>
    %cst_41 = arith.constant dense<0.000000e+00> : vector<8xf32>
    %131 = vector.multi_reduction <add>, %130, %cst_41 [1] : vector<8x128xf32> to vector<8xf32>
    %132 = vector.shape_cast %131 : vector<8xf32> to vector<8x1xf32>
    %cst_42 = arith.constant 1.280000e+02 : f32
    %133 = vector.broadcast %cst_42 : f32 to vector<8x1xf32>
    %134 = arith.divf %132, %133 : vector<8x1xf32>
    %135 = arith.mulf %129, %129 : vector<8x1xf32>
    %136 = arith.subf %134, %135 : vector<8x1xf32>
    %137 = vector.broadcast %129 : vector<8x1xf32> to vector<8x128xf32>
    %138 = arith.subf %123, %137 : vector<8x128xf32>
    %cst_43 = arith.constant 9.99999974E-6 : f32
    %139 = vector.broadcast %cst_43 : f32 to vector<8x1xf32>
    %140 = arith.addf %136, %139 : vector<8x1xf32>
    %141 = math.rsqrt %140 : vector<8x1xf32>
    %142 = vector.broadcast %141 : vector<8x1xf32> to vector<8x128xf32>
    %143 = arith.mulf %138, %142 : vector<8x128xf32>
    %144 = vector.broadcast %124 : vector<1x128xf32> to vector<8x128xf32>
    %145 = arith.mulf %143, %144 : vector<8x128xf32>
    %146 = vector.broadcast %125 : vector<1x128xf32> to vector<8x128xf32>
    %147 = arith.addf %145, %146 : vector<8x128xf32>
    %cst_44 = arith.constant dense<0.000000e+00> : vector<128xf32>
    %148 = vector.multi_reduction <add>, %147, %cst_44 [0] : vector<8x128xf32> to vector<128xf32>
    %149 = vector.shape_cast %148 : vector<128xf32> to vector<1x128xf32>
    %cst_45 = arith.constant 8.000000e+00 : f32
    %150 = vector.broadcast %cst_45 : f32 to vector<1x128xf32>
    %151 = arith.divf %149, %150 : vector<1x128xf32>
    %152 = arith.addf %88, %151 : vector<1x128xf32>
    %153 = vector.extract_strided_slice %23 {offsets = [0, 256], sizes = [8, 128], strides = [1, 1]} : vector<8x384xf32> to vector<8x128xf32>
    %154 = vector.extract_strided_slice %6 {offsets = [0, 256], sizes = [1, 128], strides = [1, 1]} : vector<1x384xf32> to vector<1x128xf32>
    %155 = vector.extract_strided_slice %7 {offsets = [0, 256], sizes = [1, 128], strides = [1, 1]} : vector<1x384xf32> to vector<1x128xf32>
    %cst_46 = arith.constant dense<0.000000e+00> : vector<8xf32>
    %156 = vector.multi_reduction <add>, %153, %cst_46 [1] : vector<8x128xf32> to vector<8xf32>
    %157 = vector.shape_cast %156 : vector<8xf32> to vector<8x1xf32>
    %cst_47 = arith.constant 1.280000e+02 : f32
    %158 = vector.broadcast %cst_47 : f32 to vector<8x1xf32>
    %159 = arith.divf %157, %158 : vector<8x1xf32>
    %160 = arith.mulf %153, %153 : vector<8x128xf32>
    %cst_48 = arith.constant dense<0.000000e+00> : vector<8xf32>
    %161 = vector.multi_reduction <add>, %160, %cst_48 [1] : vector<8x128xf32> to vector<8xf32>
    %162 = vector.shape_cast %161 : vector<8xf32> to vector<8x1xf32>
    %cst_49 = arith.constant 1.280000e+02 : f32
    %163 = vector.broadcast %cst_49 : f32 to vector<8x1xf32>
    %164 = arith.divf %162, %163 : vector<8x1xf32>
    %165 = arith.mulf %159, %159 : vector<8x1xf32>
    %166 = arith.subf %164, %165 : vector<8x1xf32>
    %167 = vector.broadcast %159 : vector<8x1xf32> to vector<8x128xf32>
    %168 = arith.subf %153, %167 : vector<8x128xf32>
    %cst_50 = arith.constant 9.99999974E-6 : f32
    %169 = vector.broadcast %cst_50 : f32 to vector<8x1xf32>
    %170 = arith.addf %166, %169 : vector<8x1xf32>
    %171 = math.rsqrt %170 : vector<8x1xf32>
    %172 = vector.broadcast %171 : vector<8x1xf32> to vector<8x128xf32>
    %173 = arith.mulf %168, %172 : vector<8x128xf32>
    %174 = vector.broadcast %154 : vector<1x128xf32> to vector<8x128xf32>
    %175 = arith.mulf %173, %174 : vector<8x128xf32>
    %176 = vector.broadcast %155 : vector<1x128xf32> to vector<8x128xf32>
    %177 = arith.addf %175, %176 : vector<8x128xf32>
    %cst_51 = arith.constant 0.000000e+00 : f32
    %178 = vector.broadcast %cst_51 : f32 to vector<8x128xf32>
    %179 = arith.maximumf %177, %178 : vector<8x128xf32>
    %cst_52 = arith.constant dense<0.000000e+00> : vector<8x128xf32>
    %180 = tpu.matmul %3, %179, %cst_52 {dimension_numbers = #tpu.dot_dimension_numbers<[1], [0], [0], [1], [0, 0, 1, 1], [], []>} : vector<8x8xf32>, vector<8x128xf32>, vector<8x128xf32> -> vector<8x128xf32>
    %181 = arith.truncf %180 : vector<8x128xf32> to vector<8x128xbf16>
    %c2 = arith.constant 2 : index
    %c0_53 = arith.constant 0 : index
    %c0_54 = arith.constant 0 : index
    %182 = vector.load %arg5[%c2, %c0_53, %c0_54] : memref<3x128x128xbf16, #tpu.memory_space<vmem>>, vector<1x128x128xbf16>
    %183 = vector.shape_cast %182 : vector<1x128x128xbf16> to vector<128x128xbf16>
    %cst_55 = arith.constant dense<0.000000e+00> : vector<8x128xf32>
    %184 = tpu.matmul %181, %183, %cst_55 {dimension_numbers = #tpu.dot_dimension_numbers<[1], [0], [0], [1], [0, 0, 1, 1], [], []>} : vector<8x128xbf16>, vector<128x128xbf16>, vector<8x128xf32> -> vector<8x128xf32>
    %185 = vector.extract_strided_slice %8 {offsets = [0, 256], sizes = [1, 128], strides = [1, 1]} : vector<1x384xf32> to vector<1x128xf32>
    %186 = vector.broadcast %185 : vector<1x128xf32> to vector<8x128xf32>
    %187 = arith.addf %184, %186 : vector<8x128xf32>
    %188 = vector.extract_strided_slice %9 {offsets = [0, 256], sizes = [1, 128], strides = [1, 1]} : vector<1x384xf32> to vector<1x128xf32>
    %189 = vector.extract_strided_slice %10 {offsets = [0, 256], sizes = [1, 128], strides = [1, 1]} : vector<1x384xf32> to vector<1x128xf32>
    %cst_56 = arith.constant dense<0.000000e+00> : vector<8xf32>
    %190 = vector.multi_reduction <add>, %187, %cst_56 [1] : vector<8x128xf32> to vector<8xf32>
    %191 = vector.shape_cast %190 : vector<8xf32> to vector<8x1xf32>
    %cst_57 = arith.constant 1.280000e+02 : f32
    %192 = vector.broadcast %cst_57 : f32 to vector<8x1xf32>
    %193 = arith.divf %191, %192 : vector<8x1xf32>
    %194 = arith.mulf %187, %187 : vector<8x128xf32>
    %cst_58 = arith.constant dense<0.000000e+00> : vector<8xf32>
    %195 = vector.multi_reduction <add>, %194, %cst_58 [1] : vector<8x128xf32> to vector<8xf32>
    %196 = vector.shape_cast %195 : vector<8xf32> to vector<8x1xf32>
    %cst_59 = arith.constant 1.280000e+02 : f32
    %197 = vector.broadcast %cst_59 : f32 to vector<8x1xf32>
    %198 = arith.divf %196, %197 : vector<8x1xf32>
    %199 = arith.mulf %193, %193 : vector<8x1xf32>
    %200 = arith.subf %198, %199 : vector<8x1xf32>
    %201 = vector.broadcast %193 : vector<8x1xf32> to vector<8x128xf32>
    %202 = arith.subf %187, %201 : vector<8x128xf32>
    %cst_60 = arith.constant 9.99999974E-6 : f32
    %203 = vector.broadcast %cst_60 : f32 to vector<8x1xf32>
    %204 = arith.addf %200, %203 : vector<8x1xf32>
    %205 = math.rsqrt %204 : vector<8x1xf32>
    %206 = vector.broadcast %205 : vector<8x1xf32> to vector<8x128xf32>
    %207 = arith.mulf %202, %206 : vector<8x128xf32>
    %208 = vector.broadcast %188 : vector<1x128xf32> to vector<8x128xf32>
    %209 = arith.mulf %207, %208 : vector<8x128xf32>
    %210 = vector.broadcast %189 : vector<1x128xf32> to vector<8x128xf32>
    %211 = arith.addf %209, %210 : vector<8x128xf32>
    %cst_61 = arith.constant dense<0.000000e+00> : vector<128xf32>
    %212 = vector.multi_reduction <add>, %211, %cst_61 [0] : vector<8x128xf32> to vector<128xf32>
    %213 = vector.shape_cast %212 : vector<128xf32> to vector<1x128xf32>
    %cst_62 = arith.constant 8.000000e+00 : f32
    %214 = vector.broadcast %cst_62 : f32 to vector<1x128xf32>
    %215 = arith.divf %213, %214 : vector<1x128xf32>
    %216 = arith.addf %152, %215 : vector<1x128xf32>
    %217 = arith.truncf %216 : vector<1x128xf32> to vector<1x128xbf16>
    %c0_63 = arith.constant 0 : index
    %c0_64 = arith.constant 0 : index
    %218 = vector.load %arg6[%c0_63, %c0_64] : memref<128x256xbf16, #tpu.memory_space<vmem>>, vector<128x256xbf16>
    %cst_65 = arith.constant dense<0.000000e+00> : vector<1x256xf32>
    %219 = tpu.matmul %217, %218, %cst_65 {dimension_numbers = #tpu.dot_dimension_numbers<[1], [0], [0], [1], [0, 0, 1, 1], [], []>} : vector<1x128xbf16>, vector<128x256xbf16>, vector<1x256xf32> -> vector<1x256xf32>
    %220 = arith.addf %219, %11 : vector<1x256xf32>
    %cst_66 = arith.constant 0.000000e+00 : f32
    %221 = vector.broadcast %cst_66 : f32 to vector<1x256xf32>
    %222 = arith.maximumf %220, %221 : vector<1x256xf32>
    %223 = arith.truncf %222 : vector<1x256xf32> to vector<1x256xbf16>
    %c0_67 = arith.constant 0 : index
    %c0_68 = arith.constant 0 : index
    %224 = vector.load %arg7[%c0_67, %c0_68] : memref<256x128xbf16, #tpu.memory_space<vmem>>, vector<256x128xbf16>
    %cst_69 = arith.constant dense<0.000000e+00> : vector<1x128xf32>
    %225 = tpu.matmul %223, %224, %cst_69 {dimension_numbers = #tpu.dot_dimension_numbers<[1], [0], [0], [1], [0, 0, 1, 1], [], []>} : vector<1x256xbf16>, vector<256x128xbf16>, vector<1x128xf32> -> vector<1x128xf32>
    %226 = arith.addf %225, %12 : vector<1x128xf32>
    %cst_70 = arith.constant dense<0.000000e+00> : vector<1xf32>
    %227 = vector.multi_reduction <add>, %226, %cst_70 [1] : vector<1x128xf32> to vector<1xf32>
    %228 = vector.shape_cast %227 : vector<1xf32> to vector<1x1xf32>
    %cst_71 = arith.constant 1.280000e+02 : f32
    %229 = vector.broadcast %cst_71 : f32 to vector<1x1xf32>
    %230 = arith.divf %228, %229 : vector<1x1xf32>
    %231 = arith.mulf %226, %226 : vector<1x128xf32>
    %cst_72 = arith.constant dense<0.000000e+00> : vector<1xf32>
    %232 = vector.multi_reduction <add>, %231, %cst_72 [1] : vector<1x128xf32> to vector<1xf32>
    %233 = vector.shape_cast %232 : vector<1xf32> to vector<1x1xf32>
    %cst_73 = arith.constant 1.280000e+02 : f32
    %234 = vector.broadcast %cst_73 : f32 to vector<1x1xf32>
    %235 = arith.divf %233, %234 : vector<1x1xf32>
    %236 = arith.mulf %230, %230 : vector<1x1xf32>
    %237 = arith.subf %235, %236 : vector<1x1xf32>
    %238 = vector.broadcast %230 : vector<1x1xf32> to vector<1x128xf32>
    %239 = arith.subf %226, %238 : vector<1x128xf32>
    %cst_74 = arith.constant 9.99999974E-6 : f32
    %240 = vector.broadcast %cst_74 : f32 to vector<1x1xf32>
    %241 = arith.addf %237, %240 : vector<1x1xf32>
    %242 = math.rsqrt %241 : vector<1x1xf32>
    %243 = vector.broadcast %242 : vector<1x1xf32> to vector<1x128xf32>
    %244 = arith.mulf %239, %243 : vector<1x128xf32>
    %245 = arith.mulf %244, %13 : vector<1x128xf32>
    %246 = arith.addf %245, %14 : vector<1x128xf32>
    %c0_75 = arith.constant 0 : index
    %c0_76 = arith.constant 0 : index
    %c0_77 = arith.constant 0 : index
    %247 = vector.load %arg10[%c0_75, %c0_76, %c0_77] : memref<1x1x128xf32, #tpu.memory_space<vmem>>, vector<1x1x128xf32>
    %248 = vector.shape_cast %247 : vector<1x1x128xf32> to vector<1x128xf32>
    %249 = vector.shape_cast %246 : vector<1x128xf32> to vector<1x1x128xf32>
    tpu.vector_store %arg10[%c0_75, %c0_76, %c0_77], %249 {strides = array<i32>} : memref<1x1x128xf32, #tpu.memory_space<vmem>>, vector<1x1x128xf32>,
    %250 = arith.truncf %246 : vector<1x128xf32> to vector<1x128xbf16>
    %c0_78 = arith.constant 0 : index
    %c0_79 = arith.constant 0 : index
    %251 = vector.load %arg8[%c0_78, %c0_79] : memref<128x128xbf16, #tpu.memory_space<vmem>>, vector<128x128xbf16>
    %cst_80 = arith.constant dense<0.000000e+00> : vector<1x128xf32>
    %252 = tpu.matmul %250, %251, %cst_80 {dimension_numbers = #tpu.dot_dimension_numbers<[1], [0], [0], [1], [0, 0, 1, 1], [], []>} : vector<1x128xbf16>, vector<128x128xbf16>, vector<1x128xf32> -> vector<1x128xf32>
    %253 = arith.addf %252, %15 : vector<1x128xf32>
    %cst_81 = arith.constant 0.000000e+00 : f32
    %254 = vector.broadcast %cst_81 : f32 to vector<1x128xf32>
    %255 = arith.maximumf %253, %254 : vector<1x128xf32>
    %256 = arith.mulf %255, %16 : vector<1x128xf32>
    %cst_82 = arith.constant dense<0.000000e+00> : vector<1xf32>
    %257 = vector.multi_reduction <add>, %256, %cst_82 [1] : vector<1x128xf32> to vector<1xf32>
    %258 = vector.shape_cast %257 : vector<1xf32> to vector<1x1xf32>
    %259 = arith.addf %258, %17 : vector<1x1xf32>
    %260 = arith.negf %259 : vector<1x1xf32>
    %261 = math.exp %260 : vector<1x1xf32>
    %cst_83 = arith.constant 1.000000e+00 : f32
    %262 = vector.broadcast %cst_83 : f32 to vector<1x1xf32>
    %263 = arith.addf %262, %261 : vector<1x1xf32>
    %264 = arith.divf %262, %263 : vector<1x1xf32>
    %c0_84 = arith.constant 0 : index
    %c0_85 = arith.constant 0 : index
    %c0_86 = arith.constant 0 : index
    %265 = vector.load %arg9[%c0_84, %c0_85, %c0_86] : memref<1x1x1xf32, #tpu.memory_space<vmem>>, vector<1x1x1xf32>
    %266 = vector.shape_cast %265 : vector<1x1x1xf32> to vector<1x1xf32>
    %267 = vector.shape_cast %264 : vector<1x1xf32> to vector<1x1x1xf32>
    tpu.vector_store %arg9[%c0_84, %c0_85, %c0_86], %267 {strides = array<i32>} : memref<1x1x1xf32, #tpu.memory_space<vmem>>, vector<1x1x1xf32>,
    return
  }
  func.func @transform_0(%arg0: i32) -> (i32, i32, i32) {
    %c0_i32 = arith.constant 0 : i32
    %c0_i32_0 = arith.constant 0 : i32
    %c0_i32_1 = arith.constant 0 : i32
    return %arg0, %c0_i32, %c0_i32_0 : i32, i32, i32
  }
  func.func @transform_1(%arg0: i32) -> (i32, i32, i32) {
    %c0_i32 = arith.constant 0 : i32
    %c0_i32_0 = arith.constant 0 : i32
    %c0_i32_1 = arith.constant 0 : i32
    return %arg0, %c0_i32, %c0_i32_0 : i32, i32, i32
  }
  func.func @transform_2(%arg0: i32) -> (i32, i32) {
    %c0_i32 = arith.constant 0 : i32
    %c0_i32_0 = arith.constant 0 : i32
    %c0_i32_1 = arith.constant 0 : i32
    return %c0_i32, %c0_i32_0 : i32, i32
  }
  func.func @transform_3(%arg0: i32) -> (i32, i32) {
    %c0_i32 = arith.constant 0 : i32
    %c0_i32_0 = arith.constant 0 : i32
    %c0_i32_1 = arith.constant 0 : i32
    return %c0_i32, %c0_i32_0 : i32, i32
  }
  func.func @transform_4(%arg0: i32) -> (i32, i32, i32) {
    %c0_i32 = arith.constant 0 : i32
    %c0_i32_0 = arith.constant 0 : i32
    %c0_i32_1 = arith.constant 0 : i32
    %c0_i32_2 = arith.constant 0 : i32
    return %c0_i32, %c0_i32_0, %c0_i32_1 : i32, i32, i32
  }
  func.func @transform_5(%arg0: i32) -> (i32, i32) {
    %c0_i32 = arith.constant 0 : i32
    %c0_i32_0 = arith.constant 0 : i32
    %c0_i32_1 = arith.constant 0 : i32
    return %c0_i32, %c0_i32_0 : i32, i32
  }
  func.func @transform_6(%arg0: i32) -> (i32, i32) {
    %c0_i32 = arith.constant 0 : i32
    %c0_i32_0 = arith.constant 0 : i32
    %c0_i32_1 = arith.constant 0 : i32
    return %c0_i32, %c0_i32_0 : i32, i32
  }
  func.func @transform_7(%arg0: i32) -> (i32, i32) {
    %c0_i32 = arith.constant 0 : i32
    %c0_i32_0 = arith.constant 0 : i32
    %c0_i32_1 = arith.constant 0 : i32
    return %c0_i32, %c0_i32_0 : i32, i32
  }
  func.func @transform_8(%arg0: i32) -> (i32, i32, i32) {
    %c0_i32 = arith.constant 0 : i32
    %c0_i32_0 = arith.constant 0 : i32
    %c0_i32_1 = arith.constant 0 : i32
    return %arg0, %c0_i32, %c0_i32_0 : i32, i32, i32
  }
  func.func @transform_9(%arg0: i32) -> (i32, i32, i32) {
    %c0_i32 = arith.constant 0 : i32
    %c0_i32_0 = arith.constant 0 : i32
    %c0_i32_1 = arith.constant 0 : i32
    return %arg0, %c0_i32, %c0_i32_0 : i32, i32, i32
  }
}

</mosaic_0001>

<llo_original>
// kernel: transposable_bcell_forward.1
$region0: #{transposable_bcell_forward.1}
  #allocation0 [shape = 'u32[]', space=smem, size = 0x4, offset = 0x4, fixed_abs, tag = 'smem constant byte address 0x4 - core index']
  #allocation1 [shape = 'u32[72,128]{1,0:T(1,128)}', space=vmem, size = 0x9000, scoped, tag = 'internal scratch']
  %s0 = inlined_call_operand.hbm [shape: f32[4,8,64], index: 0, kind: input, shape index: {}]
  %s1 = inlined_call_operand.hbm [shape: f32[4,8,8], index: 1, kind: input, shape index: {}]
  %s2 = inlined_call_operand.hbm [shape: f32[9,384], index: 2, kind: input, shape index: {}]
  %s3 = inlined_call_operand.hbm [shape: bf16[64,384], index: 3, kind: input, shape index: {}]
  %s4 = inlined_call_operand.hbm [shape: bf16[3,128,128], index: 4, kind: input, shape index: {}]
  %s5 = inlined_call_operand.hbm [shape: bf16[128,256], index: 5, kind: input, shape index: {}]
  %s6 = inlined_call_operand.hbm [shape: bf16[256,128], index: 6, kind: input, shape index: {}]
  %s7 = inlined_call_operand.hbm [shape: bf16[128,128], index: 7, kind: input, shape index: {}]
  %s8 = inlined_call_operand.vmem [shape: f32[4,1,1], index: 8, kind: output, shape index: {0}]
  %s9 = inlined_call_operand.hbm [shape: f32[4,1,128], index: 9, kind: output, shape index: {1}]
  %10 = xla_tuple %s8, %s9
  %s11 = sld [smem:[#allocation0]]
  $region105: #{transposable_bcell_forward.1} parent=0
    _
  %s13 = ssub.s32 1, %s11
  %s14 = scalar_select 0, %s13, %s11
  $region1: #{transposable_bcell_forward.1} parent=0
    #allocation2 [shape = 'u8[8192]{0}', space=vmem, size = 0x2000, scoped, tag = 'input window, operand 0']
    #allocation3 [shape = 's32[2]{0}', space=sflag, size = 0x8, scoped, tag = 'scoped memory for transposable_bcell_forward.1']
    #allocation4 [shape = 's32[2]{0}', space=sflag, size = 0x8, scoped, tag = 'scoped memory for transposable_bcell_forward.1']
    #allocation5 [shape = 'u8[8192]{0}', space=vmem, size = 0x2000, scoped, tag = 'input window, operand 1']
    #allocation6 [shape = 's32[2]{0}', space=sflag, size = 0x8, scoped, tag = 'scoped memory for transposable_bcell_forward.1']
    #allocation7 [shape = 'u8[24576]{0}', space=vmem, size = 0x6000, scoped, tag = 'input window, operand 2, single buffered']
    #allocation8 [shape = 'u8[49152]{0}', space=vmem, size = 0xc000, scoped, tag = 'input window, operand 3, single buffered']
    #allocation9 [shape = 's32[1]{0}', space=sflag, size = 0x4, scoped, tag = 'scoped memory for transposable_bcell_forward.1']
    #allocation10 [shape = 'u8[98304]{0}', space=vmem, size = 0x18000, scoped, tag = 'input window, operand 4, single buffered']
    #allocation11 [shape = 'u8[65536]{0}', space=vmem, size = 0x10000, scoped, tag = 'input window, operand 5, single buffered']
    #allocation12 [shape = 's32[1]{0}', space=sflag, size = 0x4, scoped, tag = 'scoped memory for transposable_bcell_forward.1']
    #allocation13 [shape = 'u8[65536]{0}', space=vmem, size = 0x10000, scoped, tag = 'input window, operand 6, single buffered']
    #allocation14 [shape = 'u8[32768]{0}', space=vmem, size = 0x8000, scoped, tag = 'input window, operand 7, single buffered']
    #allocation15 [shape = 's32[1]{0}', space=sflag, size = 0x4, scoped, tag = 'scoped memory for transposable_bcell_forward.1']
    #allocation16 [shape = 'u8[1024]{0}', space=vmem, size = 0x400, scoped, tag = 'output window, operand 1']
    %15 = vsyncpa [#allocation3], 0
    %s16 = scalar_lea.sflag [#allocation3], 1
    %17 = vsyncpa %s16, 0
    %18 = vsyncpa [#allocation6], 0
    %s19 = scalar_lea.sflag [#allocation6], 1
    %20 = vsyncpa %s19, 0
    %21 = vsyncpa [#allocation9], 0
    %22 = vsyncpa [#allocation12], 0
    %23 = vsyncpa [#allocation15], 0
    %24 = vsyncpa [#allocation4], 0
    %s25 = scalar_lea.sflag [#allocation4], 1
    %26 = vsyncpa %s25, 0
    loop: start=0, step=1, limit=6
    $region2: #{transposable_bcell_forward.1} parent=1 // loop_pre_header
      _
    $region3: #{transposable_bcell_forward.1} parent=1 // loop_header
      %s28 = sphi 0, %s32
      %p29 = scmp.ge.s32.totalorder %s28, 6
      %s38 = sphi 0, %s40
      %s41 = sphi 0, %s38
      %s42 = sphi 0, %s41
      %s58 = sphi 0, %s42
      %s64 = sphi 0, %s66
      %s67 = sphi 0, %s64
      %s68 = sphi 0, %s67
      %s84 = sphi 0, %s68
      %s88 = sphi 0, %s88
      %s90 = sphi 0, %s88
      %s91 = sphi 0, %s90
      %s105 = sphi 0, %s91
      %s109 = sphi 0, %s109
      %s111 = sphi 0, %s109
      %s112 = sphi 0, %s111
      %s126 = sphi 0, %s112
      %s130 = sphi 0, %s130
      %s132 = sphi 0, %s130
      %s133 = sphi 0, %s132
      %s147 = sphi 0, %s133
      %s151 = sphi 0, %s151
      %s153 = sphi 0, %s151
      %s154 = sphi 0, %s153
      %s168 = sphi 0, %s154
      %s172 = sphi 0, %s172
      %s174 = sphi 0, %s172
      %s175 = sphi 0, %s174
      %s189 = sphi 0, %s175
      %s193 = sphi 0, %s193
      %s195 = sphi 0, %s193
      %s196 = sphi 0, %s195
      %s210 = sphi 0, %s196
      %s216 = sphi 0, %s218
      %s219 = sphi 0, %s216
      %s220 = sphi 0, %s219
      %s236 = sphi 0, %s220
      %s242 = sphi 0, %s244
      %s245 = sphi 0, %s242
      %s246 = sphi 0, %s245
      %s262 = sphi 0, %s246
    $region4: #{transposable_bcell_forward.1} parent=1 // loop_header_branch
      %31 = sbr.rel (%p29) target = $region8
    $region5: #{transposable_bcell_forward.1} parent=1 // loop_body
      %s33 = ssub.s32 %s28, 1
      %s34 = ssub.s32 %s28, 2
      %s35 = sadd.s32 %s28, 1
      %s36 = ssub.s32 %s28, %s35
      %p37 = scmp.eq.s32.totalorder %s36, 0
      %s39 = sadd.s32 %s38, 1
      %s40 = scalar_select %p37, %s38, %s39
      %p43 = pneg %p37
      %p44 = scmp.eq.s32.totalorder %s28, 3
      %p45 = por %p43, %p44
      %p46 = scmp.ne.s32.totalorder %s38, %s41
      %p47 = scmp.eq.s32.totalorder %s28, 0
      %p48 = por %p46, %p47
      %p49 = scmp.ne.s32.totalorder %s38, %s41
      %p50 = scmp.eq.s32.totalorder %s33, 3
      %p51 = por %p49, %p50
      %p52 = scmp.ne.s32.totalorder %s41, %s42
      %p53 = scmp.eq.s32.totalorder %s33, 0
      %p54 = por %p52, %p53
      %p55 = scmp.ne.s32.totalorder %s41, %s42
      %p56 = scmp.eq.s32.totalorder %s34, 3
      %p57 = por %p55, %p56
      %p59 = scmp.ne.s32.totalorder %s42, %s58
      %p60 = scmp.eq.s32.totalorder %s34, 0
      %p61 = por %p59, %p60
      %s62 = ssub.s32 %s28, %s35
      %p63 = scmp.eq.s32.totalorder %s62, 0
      %s65 = sadd.s32 %s64, 1
      %s66 = scalar_select %p63, %s64, %s65
      %p69 = pneg %p63
      %p70 = scmp.eq.s32.totalorder %s28, 3
      %p71 = por %p69, %p70
      %p72 = scmp.ne.s32.totalorder %s64, %s67
      %p73 = scmp.eq.s32.totalorder %s28, 0
      %p74 = por %p72, %p73
      %p75 = scmp.ne.s32.totalorder %s64, %s67
      %p76 = scmp.eq.s32.totalorder %s33, 3
      %p77 = por %p75, %p76
      %p78 = scmp.ne.s32.totalorder %s67, %s68
      %p79 = scmp.eq.s32.totalorder %s33, 0
      %p80 = por %p78, %p79
      %p81 = scmp.ne.s32.totalorder %s67, %s68
      %p82 = scmp.eq.s32.totalorder %s34, 3
      %p83 = por %p81, %p82
      %p85 = scmp.ne.s32.totalorder %s68, %s84
      %p86 = scmp.eq.s32.totalorder %s34, 0
      %p87 = por %p85, %p86
      %s89 = sadd.s32 %s88, 1
      %p92 = scmp.eq.s32.totalorder %s28, 3
      %p93 = scmp.ne.s32.totalorder %s88, %s90
      %p94 = scmp.eq.s32.totalorder %s28, 0
      %p95 = por %p93, %p94
      %p96 = scmp.ne.s32.totalorder %s88, %s90
      %p97 = scmp.eq.s32.totalorder %s33, 3
      %p98 = por %p96, %p97
      %p99 = scmp.ne.s32.totalorder %s90, %s91
      %p100 = scmp.eq.s32.totalorder %s33, 0
      %p101 = por %p99, %p100
      %p102 = scmp.ne.s32.totalorder %s90, %s91
      %p103 = scmp.eq.s32.totalorder %s34, 3
      %p104 = por %p102, %p103
      %p106 = scmp.ne.s32.totalorder %s91, %s105
      %p107 = scmp.eq.s32.totalorder %s34, 0
      %p108 = por %p106, %p107
      %s110 = sadd.s32 %s109, 1
      %p113 = scmp.eq.s32.totalorder %s28, 3
      %p114 = scmp.ne.s32.totalorder %s109, %s111
      %p115 = scmp.eq.s32.totalorder %s28, 0
      %p116 = por %p114, %p115
      %p117 = scmp.ne.s32.totalorder %s109, %s111
      %p118 = scmp.eq.s32.totalorder %s33, 3
      %p119 = por %p117, %p118
      %p120 = scmp.ne.s32.totalorder %s111, %s112
      %p121 = scmp.eq.s32.totalorder %s33, 0
      %p122 = por %p120, %p121
      %p123 = scmp.ne.s32.totalorder %s111, %s112
      %p124 = scmp.eq.s32.totalorder %s34, 3
      %p125 = por %p123, %p124
      %p127 = scmp.ne.s32.totalorder %s112, %s126
      %p128 = scmp.eq.s32.totalorder %s34, 0
      %p129 = por %p127, %p128
      %s131 = sadd.s32 %s130, 1
      %p134 = scmp.eq.s32.totalorder %s28, 3
      %p135 = scmp.ne.s32.totalorder %s130, %s132
      %p136 = scmp.eq.s32.totalorder %s28, 0
      %p137 = por %p135, %p136
      %p138 = scmp.ne.s32.totalorder %s130, %s132
      %p139 = scmp.eq.s32.totalorder %s33, 3
      %p140 = por %p138, %p139
      %p141 = scmp.ne.s32.totalorder %s132, %s133
      %p142 = scmp.eq.s32.totalorder %s33, 0
      %p143 = por %p141, %p142
      %p144 = scmp.ne.s32.totalorder %s132, %s133
      %p145 = scmp.eq.s32.totalorder %s34, 3
      %p146 = por %p144, %p145
      %p148 = scmp.ne.s32.totalorder %s133, %s147
      %p149 = scmp.eq.s32.totalorder %s34, 0
      %p150 = por %p148, %p149
      %s152 = sadd.s32 %s151, 1
      %p155 = scmp.eq.s32.totalorder %s28, 3
      %p156 = scmp.ne.s32.totalorder %s151, %s153
      %p157 = scmp.eq.s32.totalorder %s28, 0
      %p158 = por %p156, %p157
      %p159 = scmp.ne.s32.totalorder %s151, %s153
      %p160 = scmp.eq.s32.totalorder %s33, 3
      %p161 = por %p159, %p160
      %p162 = scmp.ne.s32.totalorder %s153, %s154
      %p163 = scmp.eq.s32.totalorder %s33, 0
      %p164 = por %p162, %p163
      %p165 = scmp.ne.s32.totalorder %s153, %s154
      %p166 = scmp.eq.s32.totalorder %s34, 3
      %p167 = por %p165, %p166
      %p169 = scmp.ne.s32.totalorder %s154, %s168
      %p170 = scmp.eq.s32.totalorder %s34, 0
      %p171 = por %p169, %p170
      %s173 = sadd.s32 %s172, 1
      %p176 = scmp.eq.s32.totalorder %s28, 3
      %p177 = scmp.ne.s32.totalorder %s172, %s174
      %p178 = scmp.eq.s32.totalorder %s28, 0
      %p179 = por %p177, %p178
      %p180 = scmp.ne.s32.totalorder %s172, %s174
      %p181 = scmp.eq.s32.totalorder %s33, 3
      %p182 = por %p180, %p181
      %p183 = scmp.ne.s32.totalorder %s174, %s175
      %p184 = scmp.eq.s32.totalorder %s33, 0
      %p185 = por %p183, %p184
      %p186 = scmp.ne.s32.totalorder %s174, %s175
      %p187 = scmp.eq.s32.totalorder %s34, 3
      %p188 = por %p186, %p187
      %p190 = scmp.ne.s32.totalorder %s175, %s189
      %p191 = scmp.eq.s32.totalorder %s34, 0
      %p192 = por %p190, %p191
      %s194 = sadd.s32 %s193, 1
      %p197 = scmp.eq.s32.totalorder %s28, 3
      %p198 = scmp.ne.s32.totalorder %s193, %s195
      %p199 = scmp.eq.s32.totalorder %s28, 0
      %p200 = por %p198, %p199
      %p201 = scmp.ne.s32.totalorder %s193, %s195
      %p202 = scmp.eq.s32.totalorder %s33, 3
      %p203 = por %p201, %p202
      %p204 = scmp.ne.s32.totalorder %s195, %s196
      %p205 = scmp.eq.s32.totalorder %s33, 0
      %p206 = por %p204, %p205
      %p207 = scmp.ne.s32.totalorder %s195, %s196
      %p208 = scmp.eq.s32.totalorder %s34, 3
      %p209 = por %p207, %p208
      %p211 = scmp.ne.s32.totalorder %s196, %s210
      %p212 = scmp.eq.s32.totalorder %s34, 0
      %p213 = por %p211, %p212
      %s214 = ssub.s32 %s28, %s35
      %p215 = scmp.eq.s32.totalorder %s214, 0
      %s217 = sadd.s32 %s216, 1
      %s218 = scalar_select %p215, %s216, %s217
      %p221 = pneg %p215
      %p222 = scmp.eq.s32.totalorder %s28, 3
      %p223 = por %p221, %p222
      %p224 = scmp.ne.s32.totalorder %s216, %s219
      %p225 = scmp.eq.s32.totalorder %s28, 0
      %p226 = por %p224, %p225
      %p227 = scmp.ne.s32.totalorder %s216, %s219
      %p228 = scmp.eq.s32.totalorder %s33, 3
      %p229 = por %p227, %p228
      %p230 = scmp.ne.s32.totalorder %s219, %s220
      %p231 = scmp.eq.s32.totalorder %s33, 0
      %p232 = por %p230, %p231
      %p233 = scmp.ne.s32.totalorder %s219, %s220
      %p234 = scmp.eq.s32.totalorder %s34, 3
      %p235 = por %p233, %p234
      %p237 = scmp.ne.s32.totalorder %s220, %s236
      %p238 = scmp.eq.s32.totalorder %s34, 0
      %p239 = por %p237, %p238
      %s240 = ssub.s32 %s28, %s35
      %p241 = scmp.eq.s32.totalorder %s240, 0
      %s243 = sadd.s32 %s242, 1
      %s244 = scalar_select %p241, %s242, %s243
      %p247 = pneg %p241
      %p248 = scmp.eq.s32.totalorder %s28, 3
      %p249 = por %p247, %p248
      %p250 = scmp.ne.s32.totalorder %s242, %s245
      %p251 = scmp.eq.s32.totalorder %s28, 0
      %p252 = por %p250, %p251
      %p253 = scmp.ne.s32.totalorder %s242, %s245
      %p254 = scmp.eq.s32.totalorder %s33, 3
      %p255 = por %p253, %p254
      %p256 = scmp.ne.s32.totalorder %s245, %s246
      %p257 = scmp.eq.s32.totalorder %s33, 0
      %p258 = por %p256, %p257
      %p259 = scmp.ne.s32.totalorder %s245, %s246
      %p260 = scmp.eq.s32.totalorder %s34, 3
      %p261 = por %p259, %p260
      %p263 = scmp.ne.s32.totalorder %s246, %s262
      %p264 = scmp.eq.s32.totalorder %s34, 0
      %p265 = por %p263, %p264
      %p266 = scmp.le.s32.totalorder 1, %s28
      %p267 = scmp.lt.s32.totalorder %s28, 5
      %p268 = pnand %p266, %p267
      %p269 = pneg %p268
      // Predicated region
      $region9: #{transposable_bcell_forward.1} parent=5 // pred_check
        _
      $region10: #{transposable_bcell_forward.1} parent=5 // pred_check_branch
        %271 = sbr.rel (%p268) target = $region12
      $region11: #{transposable_bcell_forward.1} parent=5 // pred_region
        %s272 = ssub.s32 %s28, 1
        // Predicated region
        $region13: #{transposable_bcell_forward.1} parent=11 // pred_check
          %p273 = pneg %p101
        $region14: #{transposable_bcell_forward.1} parent=11 // pred_check_branch
          %275 = sbr.rel (%p273) target = $region16
        $region15: #{transposable_bcell_forward.1} parent=11 // pred_region
          %277 = vsyncadd [#allocation6], 0
          %s278 = sshll.u32 %s2, 4
          %s279 = int_to_ptr.hbm [resolvable:$true] %s278
          %s280 = sshll.u32 [#allocation7], 4
          %s281 = int_to_ptr.vmem [resolvable:$true] %s280
          %286 = dma.hbm_to_vmem [thread:$0]  %s279, 768, %s281, [#allocation6], 384, 384, 24
        $region16: #{transposable_bcell_forward.1} parent=11 // pred_fallthru
          _
        // Predicated region
        $region17: #{transposable_bcell_forward.1} parent=11 // pred_check
          %p287 = pneg %p122
        $region18: #{transposable_bcell_forward.1} parent=11 // pred_check_branch
          %289 = sbr.rel (%p287) target = $region20
        $region19: #{transposable_bcell_forward.1} parent=11 // pred_region
          %291 = vsyncadd [#allocation9], 0
          %s292 = sshll.u32 %s3, 4
          %s293 = int_to_ptr.hbm [resolvable:$true] %s292
          %s294 = sshll.u32 [#allocation8], 4
          %s295 = int_to_ptr.vmem [resolvable:$true] %s294
          %300 = dma.hbm_to_vmem [thread:$0]  %s293, 1536, %s295, [#allocation9], 192, 192, 12
        $region20: #{transposable_bcell_forward.1} parent=11 // pred_fallthru
          _
        // Predicated region
        $region21: #{transposable_bcell_forward.1} parent=11 // pred_check
          %p301 = pneg %p143
        $region22: #{transposable_bcell_forward.1} parent=11 // pred_check_branch
          %303 = sbr.rel (%p301) target = $region24
        $region23: #{transposable_bcell_forward.1} parent=11 // pred_region
          %305 = vsyncadd [#allocation9], 0
          %s306 = sshll.u32 %s4, 4
          %s307 = int_to_ptr.hbm [resolvable:$true] %s306
          %s308 = sshll.u32 [#allocation10], 4
          %s309 = int_to_ptr.vmem [resolvable:$true] %s308
          %314 = dma.hbm_to_vmem [thread:$0]  %s307, 3072, %s309, [#allocation9], 64, 64, 4
        $region24: #{transposable_bcell_forward.1} parent=11 // pred_fallthru
          _
        // Predicated region
        $region25: #{transposable_bcell_forward.1} parent=11 // pred_check
          %p315 = pneg %p164
        $region26: #{transposable_bcell_forward.1} parent=11 // pred_check_branch
          %317 = sbr.rel (%p315) target = $region28
        $region27: #{transposable_bcell_forward.1} parent=11 // pred_region
          %319 = vsyncadd [#allocation12], 0
          %s320 = sshll.u32 %s5, 4
          %s321 = int_to_ptr.hbm [resolvable:$true] %s320
          %s322 = sshll.u32 [#allocation11], 4
          %s323 = int_to_ptr.vmem [resolvable:$true] %s322
          %328 = dma.hbm_to_vmem [thread:$0]  %s321, 2048, %s323, [#allocation12], 128, 128, 8
        $region28: #{transposable_bcell_forward.1} parent=11 // pred_fallthru
          _
        // Predicated region
        $region29: #{transposable_bcell_forward.1} parent=11 // pred_check
          %p329 = pneg %p185
        $region30: #{transposable_bcell_forward.1} parent=11 // pred_check_branch
          %331 = sbr.rel (%p329) target = $region32
        $region31: #{transposable_bcell_forward.1} parent=11 // pred_region
          %333 = vsyncadd [#allocation12], 0
          %s334 = sshll.u32 %s6, 4
          %s335 = int_to_ptr.hbm [resolvable:$true] %s334
          %s336 = sshll.u32 [#allocation13], 4
          %s337 = int_to_ptr.vmem [resolvable:$true] %s336
          %342 = dma.hbm_to_vmem [thread:$0]  %s335, 2048, %s337, [#allocation12], 64, 64, 4
        $region32: #{transposable_bcell_forward.1} parent=11 // pred_fallthru
          _
        // Predicated region
        $region33: #{transposable_bcell_forward.1} parent=11 // pred_check
          %p343 = pneg %p206
        $region34: #{transposable_bcell_forward.1} parent=11 // pred_check_branch
          %345 = sbr.rel (%p343) target = $region36
        $region35: #{transposable_bcell_forward.1} parent=11 // pred_region
          %347 = vsyncadd [#allocation15], 0
          %s348 = sshll.u32 %s7, 4
          %s349 = int_to_ptr.hbm [resolvable:$true] %s348
          %s350 = sshll.u32 [#allocation14], 4
          %s351 = int_to_ptr.vmem [resolvable:$true] %s350
          %356 = dma.hbm_to_vmem [thread:$0]  %s349, 1024, %s351, [#allocation15], 64, 64, 4
        $region36: #{transposable_bcell_forward.1} parent=11 // pred_fallthru
          _
      $region12: #{transposable_bcell_forward.1} parent=5 // pred_fallthru
        _
      %p357 = scmp.lt.s32.totalorder %s28, 4
      // Predicated region
      $region37: #{transposable_bcell_forward.1} parent=5 // pred_check
        %p358 = pneg %p357
      $region38: #{transposable_bcell_forward.1} parent=5 // pred_check_branch
        %360 = sbr.rel (%p358) target = $region40
      $region39: #{transposable_bcell_forward.1} parent=5 // pred_region
        // Predicated region
        $region41: #{transposable_bcell_forward.1} parent=39 // pred_check
          %p361 = pneg %p48
        $region42: #{transposable_bcell_forward.1} parent=39 // pred_check_branch
          %363 = sbr.rel (%p361) target = $region44
        $region43: #{transposable_bcell_forward.1} parent=39 // pred_region
          %s364 = sand.u32 %s38, 1
          %s365 = scalar_lea.sflag [#allocation3], %s364
          %s366 = sand.u32 %s38, 1
          %s367 = smul.addr %s366, 8
          %s368 = scalar_lea.vmem [#allocation2], %s367
          %370 = vsyncadd %s365, 0
          %s371 = smul.addr %s28, 8
          %s372 = scalar_lea.hbm %s0, %s371
          %s374 = sshll.u32 %s372, 4
          %s375 = int_to_ptr.hbm [resolvable:$true] %s374
          %s376 = sshll.u32 %s368, 4
          %s377 = int_to_ptr.vmem [resolvable:$true] %s376
          %379 = dma.hbm_to_vmem [thread:$0]  %s375, 128, %s377, %s365
        $region44: #{transposable_bcell_forward.1} parent=39 // pred_fallthru
          _
        // Predicated region
        $region45: #{transposable_bcell_forward.1} parent=39 // pred_check
          %p380 = pneg %p74
        $region46: #{transposable_bcell_forward.1} parent=39 // pred_check_branch
          %382 = sbr.rel (%p380) target = $region48
        $region47: #{transposable_bcell_forward.1} parent=39 // pred_region
          %s383 = sand.u32 %s28, 1
          %s384 = scalar_lea.sflag [#allocation6], %s383
          %s385 = sand.u32 %s64, 1
          %s386 = smul.addr %s385, 8
          %s387 = scalar_lea.vmem [#allocation5], %s386
          %389 = vsyncadd %s384, 0
          %s390 = smul.addr %s28, 8
          %s391 = scalar_lea.hbm %s1, %s390
          %s393 = sshll.u32 %s391, 4
          %s394 = int_to_ptr.hbm [resolvable:$true] %s393
          %s395 = sshll.u32 %s387, 4
          %s396 = int_to_ptr.vmem [resolvable:$true] %s395
          %398 = dma.hbm_to_vmem [thread:$0]  %s394, 128, %s396, %s384
        $region48: #{transposable_bcell_forward.1} parent=39 // pred_fallthru
          _
      $region40: #{transposable_bcell_forward.1} parent=5 // pred_fallthru
        _
      %p399 = scmp.le.s32.totalorder 1, %s28
      %p400 = scmp.lt.s32.totalorder %s28, 5
      %p401 = pnand %p399, %p400
      %p402 = pneg %p401
      // Predicated region
      $region49: #{transposable_bcell_forward.1} parent=5 // pred_check
        _
      $region50: #{transposable_bcell_forward.1} parent=5 // pred_check_branch
        %404 = sbr.rel (%p401) target = $region52
      $region51: #{transposable_bcell_forward.1} parent=5 // pred_region
        %s405 = ssub.s32 %s28, 1
        %s406 = sand.u32 %s41, 1
        %s407 = scalar_lea.sflag [#allocation3], %s406
        %s408 = sand.u32 %s41, 1
        %s409 = smul.addr %s408, 8
        %s410 = scalar_lea.vmem [#allocation2], %s409
        // Predicated region
        $region53: #{transposable_bcell_forward.1} parent=51 // pred_check
          %p411 = pneg %p54
        $region54: #{transposable_bcell_forward.1} parent=51 // pred_check_branch
          %413 = sbr.rel (%p411) target = $region56
        $region55: #{transposable_bcell_forward.1} parent=51 // pred_region
          %415 = dma.done %s407, 128
        $region56: #{transposable_bcell_forward.1} parent=51 // pred_fallthru
          _
        %s416 = sand.u32 %s33, 1
        %s417 = scalar_lea.sflag [#allocation6], %s416
        %s418 = sand.u32 %s67, 1
        %s419 = smul.addr %s418, 8
        %s420 = scalar_lea.vmem [#allocation5], %s419
        // Predicated region
        $region57: #{transposable_bcell_forward.1} parent=51 // pred_check
          %p421 = pneg %p80
        $region58: #{transposable_bcell_forward.1} parent=51 // pred_check_branch
          %423 = sbr.rel (%p421) target = $region60
        $region59: #{transposable_bcell_forward.1} parent=51 // pred_region
          %425 = dma.done %s417, 128
        $region60: #{transposable_bcell_forward.1} parent=51 // pred_fallthru
          _
        // Predicated region
        $region61: #{transposable_bcell_forward.1} parent=51 // pred_check
          %p426 = pneg %p101
        $region62: #{transposable_bcell_forward.1} parent=51 // pred_check_branch
          %428 = sbr.rel (%p426) target = $region64
        $region63: #{transposable_bcell_forward.1} parent=51 // pred_region
          %430 = dma.done [#allocation6], 768
        $region64: #{transposable_bcell_forward.1} parent=51 // pred_fallthru
          _
        // Predicated region
        $region65: #{transposable_bcell_forward.1} parent=51 // pred_check
          %p431 = pneg %p122
        $region66: #{transposable_bcell_forward.1} parent=51 // pred_check_branch
          %433 = sbr.rel (%p431) target = $region68
        $region67: #{transposable_bcell_forward.1} parent=51 // pred_region
          %435 = dma.done [#allocation9], 1536
        $region68: #{transposable_bcell_forward.1} parent=51 // pred_fallthru
          _
        // Predicated region
        $region69: #{transposable_bcell_forward.1} parent=51 // pred_check
          %p436 = pneg %p143
        $region70: #{transposable_bcell_forward.1} parent=51 // pred_check_branch
          %438 = sbr.rel (%p436) target = $region72
        $region71: #{transposable_bcell_forward.1} parent=51 // pred_region
          %440 = dma.done [#allocation9], 3072
        $region72: #{transposable_bcell_forward.1} parent=51 // pred_fallthru
          _
        // Predicated region
        $region73: #{transposable_bcell_forward.1} parent=51 // pred_check
          %p441 = pneg %p164
        $region74: #{transposable_bcell_forward.1} parent=51 // pred_check_branch
          %443 = sbr.rel (%p441) target = $region76
        $region75: #{transposable_bcell_forward.1} parent=51 // pred_region
          %445 = dma.done [#allocation12], 2048
        $region76: #{transposable_bcell_forward.1} parent=51 // pred_fallthru
          _
        // Predicated region
        $region77: #{transposable_bcell_forward.1} parent=51 // pred_check
          %p446 = pneg %p185
        $region78: #{transposable_bcell_forward.1} parent=51 // pred_check_branch
          %448 = sbr.rel (%p446) target = $region80
        $region79: #{transposable_bcell_forward.1} parent=51 // pred_region
          %450 = dma.done [#allocation12], 2048
        $region80: #{transposable_bcell_forward.1} parent=51 // pred_fallthru
          _
        // Predicated region
        $region81: #{transposable_bcell_forward.1} parent=51 // pred_check
          %p451 = pneg %p206
        $region82: #{transposable_bcell_forward.1} parent=51 // pred_check_branch
          %453 = sbr.rel (%p451) target = $region84
        $region83: #{transposable_bcell_forward.1} parent=51 // pred_region
          %455 = dma.done [#allocation15], 1024
        $region84: #{transposable_bcell_forward.1} parent=51 // pred_fallthru
          _
        %s456 = sand.u32 %s41, 1
        %s457 = scalar_lea.sflag [#allocation3], %s456
        %s458 = sand.u32 %s41, 1
        %s459 = smul.addr %s458, 8
        %s460 = scalar_lea.vmem [#allocation2], %s459
        %p461 = pneg %p54
        %p462 = pneg %p51
        %s463 = sand.u32 %s33, 1
        %s464 = scalar_lea.sflag [#allocation6], %s463
        %s465 = sand.u32 %s67, 1
        %s466 = smul.addr %s465, 8
        %s467 = scalar_lea.vmem [#allocation5], %s466
        %p468 = pneg %p80
        %p469 = pneg %p77
        %p470 = pneg %p101
        %p471 = pneg %p98
        %p472 = pneg %p122
        %p473 = pneg %p119
        %p474 = pneg %p143
        %p475 = pneg %p140
        %p476 = pneg %p164
        %p477 = pneg %p161
        %p478 = pneg %p185
        %p479 = pneg %p182
        %p480 = pneg %p206
        %p481 = pneg %p203
        %p482 = pneg %p232
        %p483 = pneg %p229
        %p484 = scmp.lt.s32.totalorder %s33, 3
        %s485 = scalar_select %p484, %s33, 3
        %s486 = scalar_lea.vmem %s8, %s485
        %p487 = pneg %p258
        %p488 = pneg %p255
        %s489 = sand.u32 %s245, 1
        %s490 = scalar_lea.sflag [#allocation4], %s489
        %s491 = sand.u32 %s245, 1
        %s492 = scalar_lea.vmem [#allocation16], %s491
        %p493 = scmp.lt.s32.totalorder %s33, 3
        %s494 = scalar_select %p493, %s33, 3
        %s495 = scalar_lea.vmem %s8, %s494
        %v497 = vld [vmem:[%s410] sm:$0xff]
        %v498 = vld [vmem:[%s420] sm:$0xff]
        %v499 = vld [vmem:[#allocation7] sm:$0xff]
        %v500 = vld [vmem:[#allocation7 + $0x8] sm:$0xff]
        %v501 = vld [vmem:[#allocation7 + $0x10] sm:$0xff]
        %v502 = vld [vmem:[#allocation7 + $0x18] sm:$0x1]
        %v503 = vld [vmem:[#allocation7 + $0x20] sm:$0x1]
        %v504 = vld [vmem:[#allocation7 + $0x28] sm:$0x1]
        %vm505 = vcmask 64512
        %v507 = vsel %vm505, %v498, 0
        %509 = vmatpush.msra.mxu0 0.0
        %510 = vmatpush.msra.mxu0 0.0
        %511 = vmatpush.msra.mxu0 0.0
        %512 = vmatpush.msra.mxu0 0.0
        %513 = vmatpush.msra.mxu0 0.0
        %514 = vmatpush.msra.mxu0 0.0
        %515 = vmatpush.msra.mxu0 0.0
        %516 = vmatpush.msra.mxu0 0.0
        %517 = vmatpush.msra.mxu0 0.0
        %518 = vmatpush.msra.mxu0 0.0
        %519 = vmatpush.msra.mxu0 0.0
        %520 = vmatpush.msra.mxu0 0.0
        %521 = vmatpush.msra.mxu0 0.0
        %522 = vmatpush.msra.mxu0 0.0
        %523 = vmatpush.msra.mxu0 0.0
        %524 = vmatpush.msra.mxu0 %v497
        %525 = vmatmul.f32.gmra.mxu0 %v507
        %v526 = vpop.f32.mrf.mxu0
        %v527 = vadd.f32 0.0, %v526
        %528 = vdwg.mxu0
        %v529 = vpack.c.bf16 %v527, %v527
        %v530 = vld [vmem:[#allocation8] sm:$0xff]
        %v531 = vld [vmem:[#allocation8 + $0x8] sm:$0xf]
        %v532 = vld [vmem:[#allocation8 + $0xc] sm:$0xff]
        %v533 = vld [vmem:[#allocation8 + $0x14] sm:$0xf]
        %v534 = vld [vmem:[#allocation8 + $0x18] sm:$0xff]
        %v535 = vld [vmem:[#allocation8 + $0x20] sm:$0xf]
        %v536 = vld [vmem:[#allocation8 + $0x24] sm:$0xff]
        %v537 = vld [vmem:[#allocation8 + $0x2c] sm:$0xf]
        %v538 = vld [vmem:[#allocation8 + $0x30] sm:$0xff]
        %v539 = vld [vmem:[#allocation8 + $0x38] sm:$0xf]
        %v540 = vld [vmem:[#allocation8 + $0x3c] sm:$0xff]
        %v541 = vld [vmem:[#allocation8 + $0x44] sm:$0xf]
        %v542 = vld [vmem:[#allocation8 + $0x48] sm:$0xff]
        %v543 = vld [vmem:[#allocation8 + $0x50] sm:$0xf]
        %v544 = vld [vmem:[#allocation8 + $0x54] sm:$0xff]
        %v545 = vld [vmem:[#allocation8 + $0x5c] sm:$0xf]
        %v546 = vperm.slane %v499, 0
        %v547 = vperm.slane %v500, 0
        %v548 = vperm.slane %v501, 0
        %v565 = vunpack.c.l.b16 %v530
        %v566 = vunpack.c.h.b16 %v530
        %v567 = vunpack.c.l.b16 %v531
        %v568 = vunpack.c.l.b16 %v532
        %v569 = vunpack.c.h.b16 %v532
        %v570 = vunpack.c.l.b16 %v533
        %v571 = vunpack.c.l.b16 %v534
        %v572 = vunpack.c.h.b16 %v534
        %v573 = vunpack.c.l.b16 %v535
        %v574 = vunpack.c.l.b16 %v536
        %v575 = vunpack.c.h.b16 %v536
        %v576 = vunpack.c.l.b16 %v537
        %v577 = vunpack.c.l.b16 %v538
        %v578 = vunpack.c.h.b16 %v538
        %v579 = vunpack.c.l.b16 %v539
        %v580 = vunpack.c.l.b16 %v540
        %v581 = vunpack.c.h.b16 %v540
        %v582 = vunpack.c.l.b16 %v541
        %v583 = vunpack.c.l.b16 %v542
        %v584 = vunpack.c.h.b16 %v542
        %v585 = vunpack.c.l.b16 %v543
        %v586 = vunpack.c.l.b16 %v544
        %v587 = vunpack.c.h.b16 %v544
        %v588 = vunpack.c.l.b16 %v545
        %v589 = vpack.c.b16 %v568, %v565
        %v590 = vpack.c.b16 %v569, %v566
        %v591 = vpack.c.b16 %v570, %v567
        %v592 = vpack.c.b16 %v574, %v571
        %v593 = vpack.c.b16 %v575, %v572
        %v594 = vpack.c.b16 %v576, %v573
        %v595 = vpack.c.b16 %v580, %v577
        %v596 = vpack.c.b16 %v581, %v578
        %v597 = vpack.c.b16 %v582, %v579
        %v598 = vpack.c.b16 %v586, %v583
        %v599 = vpack.c.b16 %v587, %v584
        %v600 = vpack.c.b16 %v588, %v585
        %vm613 = vcmask 523264
        %v615 = vsel %vm613, %v529, 0
        %617 = vmatpush.bf16.msra.mxu0 0
        %618 = vmatpush.bf16.msra.mxu0 0
        %619 = vmatpush.bf16.msra.mxu0 0
        %620 = vmatpush.bf16.msra.mxu0 0
        %621 = vmatpush.bf16.msra.mxu0 %v598
        %622 = vmatpush.bf16.msra.mxu0 %v595
        %623 = vmatpush.bf16.msra.mxu0 %v592
        %624 = vmatpush.bf16.msra.mxu0 %v589
        %625 = vmatmul.bf16.gmra.mxu0 %v615
        %v626 = vpop.f32.mrf.mxu0
        %v627 = vadd.f32 %v546, %v626
        %v628 = vpop.f32.mrf.mxu0
        %629 = vdwg.mxu0
        %630 = vmatpush.bf16.msra.mxu0 0
        %631 = vmatpush.bf16.msra.mxu0 0
        %632 = vmatpush.bf16.msra.mxu0 0
        %633 = vmatpush.bf16.msra.mxu0 0
        %634 = vmatpush.bf16.msra.mxu0 %v599
        %635 = vmatpush.bf16.msra.mxu0 %v596
        %636 = vmatpush.bf16.msra.mxu0 %v593
        %637 = vmatpush.bf16.msra.mxu0 %v590
        %638 = vmatmul.bf16.gmra.mxu0 %v615
        %v639 = vpop.f32.mrf.mxu0
        %v640 = vadd.f32 %v547, %v639
        %v641 = vpop.f32.mrf.mxu0
        %642 = vdwg.mxu0
        %643 = vmatpush.bf16.msra.mxu0 0
        %644 = vmatpush.bf16.msra.mxu0 0
        %645 = vmatpush.bf16.msra.mxu0 0
        %646 = vmatpush.bf16.msra.mxu0 0
        %647 = vmatpush.bf16.msra.mxu0 %v600
        %648 = vmatpush.bf16.msra.mxu0 %v597
        %649 = vmatpush.bf16.msra.mxu0 %v594
        %650 = vmatpush.bf16.msra.mxu0 %v591
        %651 = vmatmul.bf16.gmra.mxu0 %v615
        %v652 = vpop.f32.mrf.mxu0
        %v653 = vadd.f32 %v548, %v652
        %v654 = vpop.f32.mrf.mxu0
        %655 = vdwg.mxu0
        %656 = vadd.xlane.f32.xlu0 %v627
        %v657 = vpop.xlane.xlu0 %656
        %v658 = vrcp.pop 128.0
        %v659 = vmul.f32 128.0, %v658
        %v660 = vsub.f32 1.0, %v659
        %v661 = vmul.f32 %v658, %v660
        %v662 = vadd.f32 %v658, %v661
        %vm663 = vweird.f32 %v658
        %v664 = vsel %vm663, %v658, %v662
        %v665 = vmul.f32 %v657, %v664
        %v666 = vmul.f32 %v627, %v627
        %667 = vadd.xlane.f32.xlu0 %v666
        %v668 = vpop.xlane.xlu0 %667
        %v669 = vmul.f32 %v668, %v664
        %v670 = vmul.f32 %v665, %v665
        %v671 = vsub.f32 %v669, %v670
        %v672 = vsub.f32 %v627, %v665
        %v673 = vadd.f32 %v671, 1e-05
        %v674 = vrsqrt.pop %v673
        %v675 = vmul.f32 %v674, %v673
        %v676 = vmul.f32 %v675, %v674
        %v677 = vmul.f32 0.5, %v676
        %v678 = vsub.f32 1.5, %v677
        %v679 = vmul.f32 %v674, %v678
        %vm680 = vweird.f32 %v673
        %vm681 = vweird.f32 %v674
        %vm682 = vmor %vm680, %vm681
        %v683 = vsel %vm682, %v674, %v679
        %v684 = vmul.f32 %v672, %v683
        %v685 = vperm.slane %v499, 1
        %v686 = vmul.f32 %v684, %v685
        %v687 = vperm.slane %v499, 2
        %v688 = vadd.f32 %v686, %v687
        %v689 = vmax.f32 %v688, 0.0
        %690 = vmatpush.msra.mxu0 0.0
        %691 = vmatpush.msra.mxu0 0.0
        %692 = vmatpush.msra.mxu0 0.0
        %693 = vmatpush.msra.mxu0 0.0
        %694 = vmatpush.msra.mxu0 0.0
        %695 = vmatpush.msra.mxu0 0.0
        %696 = vmatpush.msra.mxu0 0.0
        %697 = vmatpush.msra.mxu0 0.0
        %698 = vmatpush.msra.mxu0 0.0
        %699 = vmatpush.msra.mxu0 0.0
        %700 = vmatpush.msra.mxu0 0.0
        %701 = vmatpush.msra.mxu0 0.0
        %702 = vmatpush.msra.mxu0 0.0
        %703 = vmatpush.msra.mxu0 0.0
        %704 = vmatpush.msra.mxu0 0.0
        %705 = vmatpush.msra.mxu0 %v689
        %706 = vmatmul.f32.gmra.mxu0 %v507
        %v707 = vpop.f32.mrf.mxu0
        %v708 = vadd.f32 0.0, %v707
        %709 = vdwg.mxu0
        %v710 = vpack.c.bf16 %v708, %v708
        %v711 = vld [vmem:[#allocation10] sm:$0xf]
        %v712 = vld [vmem:[#allocation10 + $0x4] sm:$0xf]
        %v713 = vld [vmem:[#allocation10 + $0x8] sm:$0xf]
        %v714 = vld [vmem:[#allocation10 + $0xc] sm:$0xf]
        %v715 = vld [vmem:[#allocation10 + $0x10] sm:$0xf]
        %v716 = vld [vmem:[#allocation10 + $0x14] sm:$0xf]
        %v717 = vld [vmem:[#allocation10 + $0x18] sm:$0xf]
        %v718 = vld [vmem:[#allocation10 + $0x1c] sm:$0xf]
        %v719 = vld [vmem:[#allocation10 + $0x20] sm:$0xf]
        %v720 = vld [vmem:[#allocation10 + $0x24] sm:$0xf]
        %v721 = vld [vmem:[#allocation10 + $0x28] sm:$0xf]
        %v722 = vld [vmem:[#allocation10 + $0x2c] sm:$0xf]
        %v723 = vld [vmem:[#allocation10 + $0x30] sm:$0xf]
        %v724 = vld [vmem:[#allocation10 + $0x34] sm:$0xf]
        %v725 = vld [vmem:[#allocation10 + $0x38] sm:$0xf]
        %v726 = vld [vmem:[#allocation10 + $0x3c] sm:$0xf]
        %v727 = vperm.slane %v499, 3
        %v744 = vunpack.c.l.b16 %v711
        %v745 = vunpack.c.l.b16 %v712
        %v746 = vunpack.c.l.b16 %v713
        %v747 = vunpack.c.l.b16 %v714
        %v748 = vunpack.c.l.b16 %v715
        %v749 = vunpack.c.l.b16 %v716
        %v750 = vunpack.c.l.b16 %v717
        %v751 = vunpack.c.l.b16 %v718
        %v752 = vunpack.c.l.b16 %v719
        %v753 = vunpack.c.l.b16 %v720
        %v754 = vunpack.c.l.b16 %v721
        %v755 = vunpack.c.l.b16 %v722
        %v756 = vunpack.c.l.b16 %v723
        %v757 = vunpack.c.l.b16 %v724
        %v758 = vunpack.c.l.b16 %v725
        %v759 = vunpack.c.l.b16 %v726
        %v760 = vpack.c.b16 %v745, %v744
        %v761 = vpack.c.b16 %v747, %v746
        %v762 = vpack.c.b16 %v749, %v748
        %v763 = vpack.c.b16 %v751, %v750
        %v764 = vpack.c.b16 %v753, %v752
        %v765 = vpack.c.b16 %v755, %v754
        %v766 = vpack.c.b16 %v757, %v756
        %v767 = vpack.c.b16 %v759, %v758
        %776 = vmatpush.bf16.msra.mxu0 %v767
        %777 = vmatpush.bf16.msra.mxu0 %v766
        %778 = vmatpush.bf16.msra.mxu0 %v765
        %779 = vmatpush.bf16.msra.mxu0 %v764
        %780 = vmatpush.bf16.msra.mxu0 %v763
        %781 = vmatpush.bf16.msra.mxu0 %v762
        %782 = vmatpush.bf16.msra.mxu0 %v761
        %783 = vmatpush.bf16.msra.mxu0 %v760
        %784 = vmatmul.bf16.gmra.mxu0 %v710
        %v785 = vpop.f32.mrf.mxu0
        %v786 = vadd.f32 %v727, %v785
        %v787 = vpop.f32.mrf.mxu0
        %788 = vdwg.mxu0
        %789 = vadd.xlane.f32.xlu0 %v786
        %v790 = vpop.xlane.xlu0 %789
        %v791 = vmul.f32 %v790, %v664
        %v792 = vmul.f32 %v786, %v786
        %793 = vadd.xlane.f32.xlu0 %v792
        %v794 = vpop.xlane.xlu0 %793
        %v795 = vmul.f32 %v794, %v664
        %v796 = vmul.f32 %v791, %v791
        %v797 = vsub.f32 %v795, %v796
        %v798 = vsub.f32 %v786, %v791
        %v799 = vadd.f32 %v797, 1e-05
        %v800 = vrsqrt.pop %v799
        %v801 = vmul.f32 %v800, %v799
        %v802 = vmul.f32 %v801, %v800
        %v803 = vmul.f32 0.5, %v802
        %v804 = vsub.f32 1.5, %v803
        %v805 = vmul.f32 %v800, %v804
        %vm806 = vweird.f32 %v799
        %vm807 = vweird.f32 %v800
        %vm808 = vmor %vm806, %vm807
        %v809 = vsel %vm808, %v800, %v805
        %v810 = vmul.f32 %v798, %v809
        %v811 = vperm.slane %v499, 4
        %v812 = vmul.f32 %v810, %v811
        %v813 = vperm.slane %v499, 5
        %v814 = vadd.f32 %v812, %v813
        %v815 = vrot.slane %v814, 4
        %v816 = vadd.f32 %v814, %v815
        %v817 = vrot.slane %v816, 2
        %v818 = vadd.f32 %v816, %v817
        %v819 = vrot.slane %v818, 1
        %v820 = vadd.f32 %v818, %v819
        %v821 = vrcp.pop 8.0
        %v822 = vmul.f32 8.0, %v821
        %v823 = vsub.f32 1.0, %v822
        %v824 = vmul.f32 %v821, %v823
        %v825 = vadd.f32 %v821, %v824
        %vm826 = vweird.f32 %v821
        %v827 = vsel %vm826, %v821, %v825
        %v828 = vmul.f32 %v820, %v827
        %v829 = vadd.f32 %v828, 0.0
        %830 = vadd.xlane.f32.xlu0 %v640
        %v831 = vpop.xlane.xlu0 %830
        %v832 = vmul.f32 %v831, %v664
        %v833 = vmul.f32 %v640, %v640
        %834 = vadd.xlane.f32.xlu0 %v833
        %v835 = vpop.xlane.xlu0 %834
        %v836 = vmul.f32 %v835, %v664
        %v837 = vmul.f32 %v832, %v832
        %v838 = vsub.f32 %v836, %v837
        %v839 = vsub.f32 %v640, %v832
        %v840 = vadd.f32 %v838, 1e-05
        %v841 = vrsqrt.pop %v840
        %v842 = vmul.f32 %v841, %v840
        %v843 = vmul.f32 %v842, %v841
        %v844 = vmul.f32 0.5, %v843
        %v845 = vsub.f32 1.5, %v844
        %v846 = vmul.f32 %v841, %v845
        %vm847 = vweird.f32 %v840
        %vm848 = vweird.f32 %v841
        %vm849 = vmor %vm847, %vm848
        %v850 = vsel %vm849, %v841, %v846
        %v851 = vmul.f32 %v839, %v850
        %v852 = vperm.slane %v500, 1
        %v853 = vmul.f32 %v851, %v852
        %v854 = vperm.slane %v500, 2
        %v855 = vadd.f32 %v853, %v854
        %v856 = vmax.f32 %v855, 0.0
        %857 = vmatpush.msra.mxu0 0.0
        %858 = vmatpush.msra.mxu0 0.0
        %859 = vmatpush.msra.mxu0 0.0
        %860 = vmatpush.msra.mxu0 0.0
        %861 = vmatpush.msra.mxu0 0.0
        %862 = vmatpush.msra.mxu0 0.0
        %863 = vmatpush.msra.mxu0 0.0
        %864 = vmatpush.msra.mxu0 0.0
        %865 = vmatpush.msra.mxu0 0.0
        %866 = vmatpush.msra.mxu0 0.0
        %867 = vmatpush.msra.mxu0 0.0
        %868 = vmatpush.msra.mxu0 0.0
        %869 = vmatpush.msra.mxu0 0.0
        %870 = vmatpush.msra.mxu0 0.0
        %871 = vmatpush.msra.mxu0 0.0
        %872 = vmatpush.msra.mxu0 %v856
        %873 = vmatmul.f32.gmra.mxu0 %v507
        %v874 = vpop.f32.mrf.mxu0
        %v875 = vadd.f32 0.0, %v874
        %876 = vdwg.mxu0
        %v877 = vpack.c.bf16 %v875, %v875
        %s878 = scalar_lea.vmem [#allocation10], 64
        %v879 = vld [vmem:[%s878] sm:$0xf]
        %v880 = vld [vmem:[%s878 + $0x4] sm:$0xf]
        %v881 = vld [vmem:[%s878 + $0x8] sm:$0xf]
        %v882 = vld [vmem:[%s878 + $0xc] sm:$0xf]
        %v883 = vld [vmem:[%s878 + $0x10] sm:$0xf]
        %v884 = vld [vmem:[%s878 + $0x14] sm:$0xf]
        %v885 = vld [vmem:[%s878 + $0x18] sm:$0xf]
        %v886 = vld [vmem:[%s878 + $0x1c] sm:$0xf]
        %v887 = vld [vmem:[%s878 + $0x20] sm:$0xf]
        %v888 = vld [vmem:[%s878 + $0x24] sm:$0xf]
        %v889 = vld [vmem:[%s878 + $0x28] sm:$0xf]
        %v890 = vld [vmem:[%s878 + $0x2c] sm:$0xf]
        %v891 = vld [vmem:[%s878 + $0x30] sm:$0xf]
        %v892 = vld [vmem:[%s878 + $0x34] sm:$0xf]
        %v893 = vld [vmem:[%s878 + $0x38] sm:$0xf]
        %v894 = vld [vmem:[%s878 + $0x3c] sm:$0xf]
        %v895 = vperm.slane %v500, 3
        %v912 = vunpack.c.l.b16 %v879
        %v913 = vunpack.c.l.b16 %v880
        %v914 = vunpack.c.l.b16 %v881
        %v915 = vunpack.c.l.b16 %v882
        %v916 = vunpack.c.l.b16 %v883
        %v917 = vunpack.c.l.b16 %v884
        %v918 = vunpack.c.l.b16 %v885
        %v919 = vunpack.c.l.b16 %v886
        %v920 = vunpack.c.l.b16 %v887
        %v921 = vunpack.c.l.b16 %v888
        %v922 = vunpack.c.l.b16 %v889
        %v923 = vunpack.c.l.b16 %v890
        %v924 = vunpack.c.l.b16 %v891
        %v925 = vunpack.c.l.b16 %v892
        %v926 = vunpack.c.l.b16 %v893
        %v927 = vunpack.c.l.b16 %v894
        %v928 = vpack.c.b16 %v913, %v912
        %v929 = vpack.c.b16 %v915, %v914
        %v930 = vpack.c.b16 %v917, %v916
        %v931 = vpack.c.b16 %v919, %v918
        %v932 = vpack.c.b16 %v921, %v920
        %v933 = vpack.c.b16 %v923, %v922
        %v934 = vpack.c.b16 %v925, %v924
        %v935 = vpack.c.b16 %v927, %v926
        %944 = vmatpush.bf16.msra.mxu0 %v935
        %945 = vmatpush.bf16.msra.mxu0 %v934
        %946 = vmatpush.bf16.msra.mxu0 %v933
        %947 = vmatpush.bf16.msra.mxu0 %v932
        %948 = vmatpush.bf16.msra.mxu0 %v931
        %949 = vmatpush.bf16.msra.mxu0 %v930
        %950 = vmatpush.bf16.msra.mxu0 %v929
        %951 = vmatpush.bf16.msra.mxu0 %v928
        %952 = vmatmul.bf16.gmra.mxu0 %v877
        %v953 = vpop.f32.mrf.mxu0
        %v954 = vadd.f32 %v895, %v953
        %v955 = vpop.f32.mrf.mxu0
        %956 = vdwg.mxu0
        %957 = vadd.xlane.f32.xlu0 %v954
        %v958 = vpop.xlane.xlu0 %957
        %v959 = vmul.f32 %v958, %v664
        %v960 = vmul.f32 %v954, %v954
        %961 = vadd.xlane.f32.xlu0 %v960
        %v962 = vpop.xlane.xlu0 %961
        %v963 = vmul.f32 %v962, %v664
        %v964 = vmul.f32 %v959, %v959
        %v965 = vsub.f32 %v963, %v964
        %v966 = vsub.f32 %v954, %v959
        %v967 = vadd.f32 %v965, 1e-05
        %v968 = vrsqrt.pop %v967
        %v969 = vmul.f32 %v968, %v967
        %v970 = vmul.f32 %v969, %v968
        %v971 = vmul.f32 0.5, %v970
        %v972 = vsub.f32 1.5, %v971
        %v973 = vmul.f32 %v968, %v972
        %vm974 = vweird.f32 %v967
        %vm975 = vweird.f32 %v968
        %vm976 = vmor %vm974, %vm975
        %v977 = vsel %vm976, %v968, %v973
        %v978 = vmul.f32 %v966, %v977
        %v979 = vperm.slane %v500, 4
        %v980 = vmul.f32 %v978, %v979
        %v981 = vperm.slane %v500, 5
        %v982 = vadd.f32 %v980, %v981
        %v983 = vrot.slane %v982, 4
        %v984 = vadd.f32 %v982, %v983
        %v985 = vrot.slane %v984, 2
        %v986 = vadd.f32 %v984, %v985
        %v987 = vrot.slane %v986, 1
        %v988 = vadd.f32 %v986, %v987
        %v989 = vmul.f32 %v988, %v827
        %v990 = vadd.f32 %v829, %v989
        %991 = vadd.xlane.f32.xlu0 %v653
        %v992 = vpop.xlane.xlu0 %991
        %v993 = vmul.f32 %v992, %v664
        %v994 = vmul.f32 %v653, %v653
        %995 = vadd.xlane.f32.xlu0 %v994
        %v996 = vpop.xlane.xlu0 %995
        %v997 = vmul.f32 %v996, %v664
        %v998 = vmul.f32 %v993, %v993
        %v999 = vsub.f32 %v997, %v998
        %v1000 = vsub.f32 %v653, %v993
        %v1001 = vadd.f32 %v999, 1e-05
        %v1002 = vrsqrt.pop %v1001
        %v1003 = vmul.f32 %v1002, %v1001
        %v1004 = vmul.f32 %v1003, %v1002
        %v1005 = vmul.f32 0.5, %v1004
        %v1006 = vsub.f32 1.5, %v1005
        %v1007 = vmul.f32 %v1002, %v1006
        %vm1008 = vweird.f32 %v1001
        %vm1009 = vweird.f32 %v1002
        %vm1010 = vmor %vm1008, %vm1009
        %v1011 = vsel %vm1010, %v1002, %v1007
        %v1012 = vmul.f32 %v1000, %v1011
        %v1013 = vperm.slane %v501, 1
        %v1014 = vmul.f32 %v1012, %v1013
        %v1015 = vperm.slane %v501, 2
        %v1016 = vadd.f32 %v1014, %v1015
        %v1017 = vmax.f32 %v1016, 0.0
        %1018 = vmatpush.msra.mxu0 0.0
        %1019 = vmatpush.msra.mxu0 0.0
        %1020 = vmatpush.msra.mxu0 0.0
        %1021 = vmatpush.msra.mxu0 0.0
        %1022 = vmatpush.msra.mxu0 0.0
        %1023 = vmatpush.msra.mxu0 0.0
        %1024 = vmatpush.msra.mxu0 0.0
        %1025 = vmatpush.msra.mxu0 0.0
        %1026 = vmatpush.msra.mxu0 0.0
        %1027 = vmatpush.msra.mxu0 0.0
        %1028 = vmatpush.msra.mxu0 0.0
        %1029 = vmatpush.msra.mxu0 0.0
        %1030 = vmatpush.msra.mxu0 0.0
        %1031 = vmatpush.msra.mxu0 0.0
        %1032 = vmatpush.msra.mxu0 0.0
        %1033 = vmatpush.msra.mxu0 %v1017
        %1034 = vmatmul.f32.gmra.mxu0 %v507
        %v1035 = vpop.f32.mrf.mxu0
        %v1036 = vadd.f32 0.0, %v1035
        %1037 = vdwg.mxu0
        %v1038 = vpack.c.bf16 %v1036, %v1036
        %s1039 = scalar_lea.vmem [#allocation10], 128
        %v1040 = vld [vmem:[%s1039] sm:$0xf]
        %v1041 = vld [vmem:[%s1039 + $0x4] sm:$0xf]
        %v1042 = vld [vmem:[%s1039 + $0x8] sm:$0xf]
        %v1043 = vld [vmem:[%s1039 + $0xc] sm:$0xf]
        %v1044 = vld [vmem:[%s1039 + $0x10] sm:$0xf]
        %v1045 = vld [vmem:[%s1039 + $0x14] sm:$0xf]
        %v1046 = vld [vmem:[%s1039 + $0x18] sm:$0xf]
        %v1047 = vld [vmem:[%s1039 + $0x1c] sm:$0xf]
        %v1048 = vld [vmem:[%s1039 + $0x20] sm:$0xf]
        %v1049 = vld [vmem:[%s1039 + $0x24] sm:$0xf]
        %v1050 = vld [vmem:[%s1039 + $0x28] sm:$0xf]
        %v1051 = vld [vmem:[%s1039 + $0x2c] sm:$0xf]
        %v1052 = vld [vmem:[%s1039 + $0x30] sm:$0xf]
        %v1053 = vld [vmem:[%s1039 + $0x34] sm:$0xf]
        %v1054 = vld [vmem:[%s1039 + $0x38] sm:$0xf]
        %v1055 = vld [vmem:[%s1039 + $0x3c] sm:$0xf]
        %v1056 = vperm.slane %v501, 3
        %v1073 = vunpack.c.l.b16 %v1040
        %v1074 = vunpack.c.l.b16 %v1041
        %v1075 = vunpack.c.l.b16 %v1042
        %v1076 = vunpack.c.l.b16 %v1043
        %v1077 = vunpack.c.l.b16 %v1044
        %v1078 = vunpack.c.l.b16 %v1045
        %v1079 = vunpack.c.l.b16 %v1046
        %v1080 = vunpack.c.l.b16 %v1047
        %v1081 = vunpack.c.l.b16 %v1048
        %v1082 = vunpack.c.l.b16 %v1049
        %v1083 = vunpack.c.l.b16 %v1050
        %v1084 = vunpack.c.l.b16 %v1051
        %v1085 = vunpack.c.l.b16 %v1052
        %v1086 = vunpack.c.l.b16 %v1053
        %v1087 = vunpack.c.l.b16 %v1054
        %v1088 = vunpack.c.l.b16 %v1055
        %v1089 = vpack.c.b16 %v1074, %v1073
        %v1090 = vpack.c.b16 %v1076, %v1075
        %v1091 = vpack.c.b16 %v1078, %v1077
        %v1092 = vpack.c.b16 %v1080, %v1079
        %v1093 = vpack.c.b16 %v1082, %v1081
        %v1094 = vpack.c.b16 %v1084, %v1083
        %v1095 = vpack.c.b16 %v1086, %v1085
        %v1096 = vpack.c.b16 %v1088, %v1087
        %1105 = vmatpush.bf16.msra.mxu0 %v1096
        %1106 = vmatpush.bf16.msra.mxu0 %v1095
        %1107 = vmatpush.bf16.msra.mxu0 %v1094
        %1108 = vmatpush.bf16.msra.mxu0 %v1093
        %1109 = vmatpush.bf16.msra.mxu0 %v1092
        %1110 = vmatpush.bf16.msra.mxu0 %v1091
        %1111 = vmatpush.bf16.msra.mxu0 %v1090
        %1112 = vmatpush.bf16.msra.mxu0 %v1089
        %1113 = vmatmul.bf16.gmra.mxu0 %v1038
        %v1114 = vpop.f32.mrf.mxu0
        %v1115 = vadd.f32 %v1056, %v1114
        %v1116 = vpop.f32.mrf.mxu0
        %1117 = vdwg.mxu0
        %1118 = vadd.xlane.f32.xlu0 %v1115
        %v1119 = vpop.xlane.xlu0 %1118
        %v1120 = vmul.f32 %v1119, %v664
        %v1121 = vmul.f32 %v1115, %v1115
        %1122 = vadd.xlane.f32.xlu0 %v1121
        %v1123 = vpop.xlane.xlu0 %1122
        %v1124 = vmul.f32 %v1123, %v664
        %v1125 = vmul.f32 %v1120, %v1120
        %v1126 = vsub.f32 %v1124, %v1125
        %v1127 = vsub.f32 %v1115, %v1120
        %v1128 = vadd.f32 %v1126, 1e-05
        %v1129 = vrsqrt.pop %v1128
        %v1130 = vmul.f32 %v1129, %v1128
        %v1131 = vmul.f32 %v1130, %v1129
        %v1132 = vmul.f32 0.5, %v1131
        %v1133 = vsub.f32 1.5, %v1132
        %v1134 = vmul.f32 %v1129, %v1133
        %vm1135 = vweird.f32 %v1128
        %vm1136 = vweird.f32 %v1129
        %vm1137 = vmor %vm1135, %vm1136
        %v1138 = vsel %vm1137, %v1129, %v1134
        %v1139 = vmul.f32 %v1127, %v1138
        %v1140 = vperm.slane %v501, 4
        %v1141 = vmul.f32 %v1139, %v1140
        %v1142 = vperm.slane %v501, 5
        %v1143 = vadd.f32 %v1141, %v1142
        %v1144 = vrot.slane %v1143, 4
        %v1145 = vadd.f32 %v1143, %v1144
        %v1146 = vrot.slane %v1145, 2
        %v1147 = vadd.f32 %v1145, %v1146
        %v1148 = vrot.slane %v1147, 1
        %v1149 = vadd.f32 %v1147, %v1148
        %v1150 = vmul.f32 %v1149, %v827
        %v1151 = vadd.f32 %v990, %v1150
        %v1152 = vpack.c.bf16 %v1151, %v1151
        %v1153 = vld [vmem:[#allocation11] sm:$0xff]
        %v1154 = vld [vmem:[#allocation11 + $0x8] sm:$0xff]
        %v1155 = vld [vmem:[#allocation11 + $0x10] sm:$0xff]
        %v1156 = vld [vmem:[#allocation11 + $0x18] sm:$0xff]
        %v1157 = vld [vmem:[#allocation11 + $0x20] sm:$0xff]
        %v1158 = vld [vmem:[#allocation11 + $0x28] sm:$0xff]
        %v1159 = vld [vmem:[#allocation11 + $0x30] sm:$0xff]
        %v1160 = vld [vmem:[#allocation11 + $0x38] sm:$0xff]
        %v1161 = vld [vmem:[#allocation11 + $0x40] sm:$0xff]
        %v1162 = vld [vmem:[#allocation11 + $0x48] sm:$0xff]
        %v1163 = vld [vmem:[#allocation11 + $0x50] sm:$0xff]
        %v1164 = vld [vmem:[#allocation11 + $0x58] sm:$0xff]
        %v1165 = vld [vmem:[#allocation11 + $0x60] sm:$0xff]
        %v1166 = vld [vmem:[#allocation11 + $0x68] sm:$0xff]
        %v1167 = vld [vmem:[#allocation11 + $0x70] sm:$0xff]
        %v1168 = vld [vmem:[#allocation11 + $0x78] sm:$0xff]
        %v1185 = vunpack.c.l.b16 %v1153
        %v1186 = vunpack.c.h.b16 %v1153
        %v1187 = vunpack.c.l.b16 %v1154
        %v1188 = vunpack.c.h.b16 %v1154
        %v1189 = vunpack.c.l.b16 %v1155
        %v1190 = vunpack.c.h.b16 %v1155
        %v1191 = vunpack.c.l.b16 %v1156
        %v1192 = vunpack.c.h.b16 %v1156
        %v1193 = vunpack.c.l.b16 %v1157
        %v1194 = vunpack.c.h.b16 %v1157
        %v1195 = vunpack.c.l.b16 %v1158
        %v1196 = vunpack.c.h.b16 %v1158
        %v1197 = vunpack.c.l.b16 %v1159
        %v1198 = vunpack.c.h.b16 %v1159
        %v1199 = vunpack.c.l.b16 %v1160
        %v1200 = vunpack.c.h.b16 %v1160
        %v1201 = vunpack.c.l.b16 %v1161
        %v1202 = vunpack.c.h.b16 %v1161
        %v1203 = vunpack.c.l.b16 %v1162
        %v1204 = vunpack.c.h.b16 %v1162
        %v1205 = vunpack.c.l.b16 %v1163
        %v1206 = vunpack.c.h.b16 %v1163
        %v1207 = vunpack.c.l.b16 %v1164
        %v1208 = vunpack.c.h.b16 %v1164
        %v1209 = vunpack.c.l.b16 %v1165
        %v1210 = vunpack.c.h.b16 %v1165
        %v1211 = vunpack.c.l.b16 %v1166
        %v1212 = vunpack.c.h.b16 %v1166
        %v1213 = vunpack.c.l.b16 %v1167
        %v1214 = vunpack.c.h.b16 %v1167
        %v1215 = vunpack.c.l.b16 %v1168
        %v1216 = vunpack.c.h.b16 %v1168
        %v1217 = vpack.c.b16 %v1187, %v1185
        %v1218 = vpack.c.b16 %v1188, %v1186
        %v1219 = vpack.c.b16 %v1191, %v1189
        %v1220 = vpack.c.b16 %v1192, %v1190
        %v1221 = vpack.c.b16 %v1195, %v1193
        %v1222 = vpack.c.b16 %v1196, %v1194
        %v1223 = vpack.c.b16 %v1199, %v1197
        %v1224 = vpack.c.b16 %v1200, %v1198
        %v1225 = vpack.c.b16 %v1203, %v1201
        %v1226 = vpack.c.b16 %v1204, %v1202
        %v1227 = vpack.c.b16 %v1207, %v1205
        %v1228 = vpack.c.b16 %v1208, %v1206
        %v1229 = vpack.c.b16 %v1211, %v1209
        %v1230 = vpack.c.b16 %v1212, %v1210
        %v1231 = vpack.c.b16 %v1215, %v1213
        %v1232 = vpack.c.b16 %v1216, %v1214
        %v1251 = vrot.slane %v499, 6
        %v1252 = vrot.slane %v500, 6
        %1255 = vmatpush.bf16.msra.mxu0 %v1231
        %1256 = vmatpush.bf16.msra.mxu0 %v1229
        %1257 = vmatpush.bf16.msra.mxu0 %v1227
        %1258 = vmatpush.bf16.msra.mxu0 %v1225
        %1259 = vmatpush.bf16.msra.mxu0 %v1223
        %1260 = vmatpush.bf16.msra.mxu0 %v1221
        %1261 = vmatpush.bf16.msra.mxu0 %v1219
        %1262 = vmatpush.bf16.msra.mxu0 %v1217
        %1263 = vmatmul.bf16.gmra.mxu0 %v1152
        %v1264 = vpop.f32.mrf.mxu0
        %v1265 = vadd.f32 %v1251, %v1264
        %v1266 = vpop.f32.mrf.mxu0
        %1267 = vdwg.mxu0
        %1268 = vmatpush.bf16.msra.mxu0 %v1232
        %1269 = vmatpush.bf16.msra.mxu0 %v1230
        %1270 = vmatpush.bf16.msra.mxu0 %v1228
        %1271 = vmatpush.bf16.msra.mxu0 %v1226
        %1272 = vmatpush.bf16.msra.mxu0 %v1224
        %1273 = vmatpush.bf16.msra.mxu0 %v1222
        %1274 = vmatpush.bf16.msra.mxu0 %v1220
        %1275 = vmatpush.bf16.msra.mxu0 %v1218
        %1276 = vmatmul.bf16.gmra.mxu0 %v1152
        %v1277 = vpop.f32.mrf.mxu0
        %v1278 = vadd.f32 %v1252, %v1277
        %v1279 = vpop.f32.mrf.mxu0
        %1280 = vdwg.mxu0
        %v1281 = vmax.f32 %v1265, 0.0
        %v1282 = vmax.f32 %v1278, 0.0
        %v1283 = vpack.c.bf16 %v1281, %v1281
        %v1284 = vpack.c.bf16 %v1282, %v1282
        %v1285 = vld [vmem:[#allocation13] sm:$0xf]
        %v1286 = vld [vmem:[#allocation13 + $0x4] sm:$0xf]
        %v1287 = vld [vmem:[#allocation13 + $0x8] sm:$0xf]
        %v1288 = vld [vmem:[#allocation13 + $0xc] sm:$0xf]
        %v1289 = vld [vmem:[#allocation13 + $0x10] sm:$0xf]
        %v1290 = vld [vmem:[#allocation13 + $0x14] sm:$0xf]
        %v1291 = vld [vmem:[#allocation13 + $0x18] sm:$0xf]
        %v1292 = vld [vmem:[#allocation13 + $0x1c] sm:$0xf]
        %v1293 = vld [vmem:[#allocation13 + $0x20] sm:$0xf]
        %v1294 = vld [vmem:[#allocation13 + $0x24] sm:$0xf]
        %v1295 = vld [vmem:[#allocation13 + $0x28] sm:$0xf]
        %v1296 = vld [vmem:[#allocation13 + $0x2c] sm:$0xf]
        %v1297 = vld [vmem:[#allocation13 + $0x30] sm:$0xf]
        %v1298 = vld [vmem:[#allocation13 + $0x34] sm:$0xf]
        %v1299 = vld [vmem:[#allocation13 + $0x38] sm:$0xf]
        %v1300 = vld [vmem:[#allocation13 + $0x3c] sm:$0xf]
        %v1301 = vld [vmem:[#allocation13 + $0x40] sm:$0xf]
        %v1302 = vld [vmem:[#allocation13 + $0x44] sm:$0xf]
        %v1303 = vld [vmem:[#allocation13 + $0x48] sm:$0xf]
        %v1304 = vld [vmem:[#allocation13 + $0x4c] sm:$0xf]
        %v1305 = vld [vmem:[#allocation13 + $0x50] sm:$0xf]
        %v1306 = vld [vmem:[#allocation13 + $0x54] sm:$0xf]
        %v1307 = vld [vmem:[#allocation13 + $0x58] sm:$0xf]
        %v1308 = vld [vmem:[#allocation13 + $0x5c] sm:$0xf]
        %v1309 = vld [vmem:[#allocation13 + $0x60] sm:$0xf]
        %v1310 = vld [vmem:[#allocation13 + $0x64] sm:$0xf]
        %v1311 = vld [vmem:[#allocation13 + $0x68] sm:$0xf]
        %v1312 = vld [vmem:[#allocation13 + $0x6c] sm:$0xf]
        %v1313 = vld [vmem:[#allocation13 + $0x70] sm:$0xf]
        %v1314 = vld [vmem:[#allocation13 + $0x74] sm:$0xf]
        %v1315 = vld [vmem:[#allocation13 + $0x78] sm:$0xf]
        %v1316 = vld [vmem:[#allocation13 + $0x7c] sm:$0xf]
        %v1349 = vunpack.c.l.b16 %v1285
        %v1350 = vunpack.c.l.b16 %v1286
        %v1351 = vunpack.c.l.b16 %v1287
        %v1352 = vunpack.c.l.b16 %v1288
        %v1353 = vunpack.c.l.b16 %v1289
        %v1354 = vunpack.c.l.b16 %v1290
        %v1355 = vunpack.c.l.b16 %v1291
        %v1356 = vunpack.c.l.b16 %v1292
        %v1357 = vunpack.c.l.b16 %v1293
        %v1358 = vunpack.c.l.b16 %v1294
        %v1359 = vunpack.c.l.b16 %v1295
        %v1360 = vunpack.c.l.b16 %v1296
        %v1361 = vunpack.c.l.b16 %v1297
        %v1362 = vunpack.c.l.b16 %v1298
        %v1363 = vunpack.c.l.b16 %v1299
        %v1364 = vunpack.c.l.b16 %v1300
        %v1365 = vunpack.c.l.b16 %v1301
        %v1366 = vunpack.c.l.b16 %v1302
        %v1367 = vunpack.c.l.b16 %v1303
        %v1368 = vunpack.c.l.b16 %v1304
        %v1369 = vunpack.c.l.b16 %v1305
        %v1370 = vunpack.c.l.b16 %v1306
        %v1371 = vunpack.c.l.b16 %v1307
        %v1372 = vunpack.c.l.b16 %v1308
        %v1373 = vunpack.c.l.b16 %v1309
        %v1374 = vunpack.c.l.b16 %v1310
        %v1375 = vunpack.c.l.b16 %v1311
        %v1376 = vunpack.c.l.b16 %v1312
        %v1377 = vunpack.c.l.b16 %v1313
        %v1378 = vunpack.c.l.b16 %v1314
        %v1379 = vunpack.c.l.b16 %v1315
        %v1380 = vunpack.c.l.b16 %v1316
        %v1381 = vpack.c.b16 %v1350, %v1349
        %v1382 = vpack.c.b16 %v1352, %v1351
        %v1383 = vpack.c.b16 %v1354, %v1353
        %v1384 = vpack.c.b16 %v1356, %v1355
        %v1385 = vpack.c.b16 %v1358, %v1357
        %v1386 = vpack.c.b16 %v1360, %v1359
        %v1387 = vpack.c.b16 %v1362, %v1361
        %v1388 = vpack.c.b16 %v1364, %v1363
        %v1389 = vpack.c.b16 %v1366, %v1365
        %v1390 = vpack.c.b16 %v1368, %v1367
        %v1391 = vpack.c.b16 %v1370, %v1369
        %v1392 = vpack.c.b16 %v1372, %v1371
        %v1393 = vpack.c.b16 %v1374, %v1373
        %v1394 = vpack.c.b16 %v1376, %v1375
        %v1395 = vpack.c.b16 %v1378, %v1377
        %v1396 = vpack.c.b16 %v1380, %v1379
        %v1413 = vrot.slane %v499, 7
        %1415 = vmatpush.bf16.msra.mxu0 %v1388
        %1416 = vmatpush.bf16.msra.mxu0 %v1387
        %1417 = vmatpush.bf16.msra.mxu0 %v1386
        %1418 = vmatpush.bf16.msra.mxu0 %v1385
        %1419 = vmatpush.bf16.msra.mxu0 %v1384
        %1420 = vmatpush.bf16.msra.mxu0 %v1383
        %1421 = vmatpush.bf16.msra.mxu0 %v1382
        %1422 = vmatpush.bf16.msra.mxu0 %v1381
        %1423 = vmatmul.bf16.gmra.mxu0 %v1283
        %v1424 = vpop.f32.mrf.mxu0
        %v1425 = vadd.f32 %v1413, %v1424
        %v1426 = vpop.f32.mrf.mxu0
        %1427 = vdwg.mxu0
        %1428 = vmatpush.bf16.msra.mxu0 %v1396
        %1429 = vmatpush.bf16.msra.mxu0 %v1395
        %1430 = vmatpush.bf16.msra.mxu0 %v1394
        %1431 = vmatpush.bf16.msra.mxu0 %v1393
        %1432 = vmatpush.bf16.msra.mxu0 %v1392
        %1433 = vmatpush.bf16.msra.mxu0 %v1391
        %1434 = vmatpush.bf16.msra.mxu0 %v1390
        %1435 = vmatpush.bf16.msra.mxu0 %v1389
        %1436 = vmatmul.bf16.gmra.mxu0 %v1284
        %v1437 = vpop.f32.mrf.mxu0
        %v1438 = vadd.f32 %v1425, %v1437
        %v1439 = vpop.f32.mrf.mxu0
        %1440 = vdwg.mxu0
        %vm1441 = vcmask 1040384
        %v1442 = vsel %vm1441, %v1438, 0.0
        %1443 = vadd.xlane.f32.xlu0 %v1442
        %v1444 = vpop.xlane.xlu0 %1443
        %v1445 = vmul.f32 %v1444, %v664
        %v1446 = vmul.f32 %v1438, %v1438
        %v1447 = vsel %vm1441, %v1446, 0.0
        %1448 = vadd.xlane.f32.xlu0 %v1447
        %v1449 = vpop.xlane.xlu0 %1448
        %v1450 = vmul.f32 %v1449, %v664
        %v1451 = vmul.f32 %v1445, %v1445
        %v1452 = vsub.f32 %v1450, %v1451
        %v1453 = vsub.f32 %v1438, %v1445
        %v1454 = vadd.f32 %v1452, 1e-05
        %v1455 = vrsqrt.pop %v1454
        %v1456 = vmul.f32 %v1455, %v1454
        %v1457 = vmul.f32 %v1456, %v1455
        %v1458 = vmul.f32 0.5, %v1457
        %v1459 = vsub.f32 1.5, %v1458
        %v1460 = vmul.f32 %v1455, %v1459
        %vm1461 = vweird.f32 %v1454
        %vm1462 = vweird.f32 %v1455
        %vm1463 = vmor %vm1461, %vm1462
        %v1464 = vsel %vm1463, %v1455, %v1460
        %v1465 = vmul.f32 %v1453, %v1464
        %v1466 = vrot.slane %v500, 7
        %v1468 = vmul.f32 %v1465, %v1466
        %v1470 = vrot.slane %v501, 7
        %v1472 = vadd.f32 %v1468, %v1470
        %1473 = vst [vmem:[%s492] sm:$0x1] %v1472
        %v1474 = vpack.c.bf16 %v1472, %v1472
        %v1475 = vld [vmem:[#allocation14] sm:$0xf]
        %v1476 = vld [vmem:[#allocation14 + $0x4] sm:$0xf]
        %v1477 = vld [vmem:[#allocation14 + $0x8] sm:$0xf]
        %v1478 = vld [vmem:[#allocation14 + $0xc] sm:$0xf]
        %v1479 = vld [vmem:[#allocation14 + $0x10] sm:$0xf]
        %v1480 = vld [vmem:[#allocation14 + $0x14] sm:$0xf]
        %v1481 = vld [vmem:[#allocation14 + $0x18] sm:$0xf]
        %v1482 = vld [vmem:[#allocation14 + $0x1c] sm:$0xf]
        %v1483 = vld [vmem:[#allocation14 + $0x20] sm:$0xf]
        %v1484 = vld [vmem:[#allocation14 + $0x24] sm:$0xf]
        %v1485 = vld [vmem:[#allocation14 + $0x28] sm:$0xf]
        %v1486 = vld [vmem:[#allocation14 + $0x2c] sm:$0xf]
        %v1487 = vld [vmem:[#allocation14 + $0x30] sm:$0xf]
        %v1488 = vld [vmem:[#allocation14 + $0x34] sm:$0xf]
        %v1489 = vld [vmem:[#allocation14 + $0x38] sm:$0xf]
        %v1490 = vld [vmem:[#allocation14 + $0x3c] sm:$0xf]
        %v1507 = vunpack.c.l.b16 %v1475
        %v1508 = vunpack.c.l.b16 %v1476
        %v1509 = vunpack.c.l.b16 %v1477
        %v1510 = vunpack.c.l.b16 %v1478
        %v1511 = vunpack.c.l.b16 %v1479
        %v1512 = vunpack.c.l.b16 %v1480
        %v1513 = vunpack.c.l.b16 %v1481
        %v1514 = vunpack.c.l.b16 %v1482
        %v1515 = vunpack.c.l.b16 %v1483
        %v1516 = vunpack.c.l.b16 %v1484
        %v1517 = vunpack.c.l.b16 %v1485
        %v1518 = vunpack.c.l.b16 %v1486
        %v1519 = vunpack.c.l.b16 %v1487
        %v1520 = vunpack.c.l.b16 %v1488
        %v1521 = vunpack.c.l.b16 %v1489
        %v1522 = vunpack.c.l.b16 %v1490
        %v1523 = vpack.c.b16 %v1508, %v1507
        %v1524 = vpack.c.b16 %v1510, %v1509
        %v1525 = vpack.c.b16 %v1512, %v1511
        %v1526 = vpack.c.b16 %v1514, %v1513
        %v1527 = vpack.c.b16 %v1516, %v1515
        %v1528 = vpack.c.b16 %v1518, %v1517
        %v1529 = vpack.c.b16 %v1520, %v1519
        %v1530 = vpack.c.b16 %v1522, %v1521
        %1539 = vmatpush.bf16.msra.mxu0 %v1530
        %1540 = vmatpush.bf16.msra.mxu0 %v1529
        %1541 = vmatpush.bf16.msra.mxu0 %v1528
        %1542 = vmatpush.bf16.msra.mxu0 %v1527
        %1543 = vmatpush.bf16.msra.mxu0 %v1526
        %1544 = vmatpush.bf16.msra.mxu0 %v1525
        %1545 = vmatpush.bf16.msra.mxu0 %v1524
        %1546 = vmatpush.bf16.msra.mxu0 %v1523
        %1547 = vmatmul.bf16.gmra.mxu0 %v1474
        %v1548 = vpop.f32.mrf.mxu0
        %v1549 = vadd.f32 %v502, %v1548
        %v1550 = vpop.f32.mrf.mxu0
        %1551 = vdwg.mxu0
        %v1552 = vmax.f32 %v1549, 0.0
        %v1553 = vmul.f32 %v1552, %v503
        %v1554 = vsel %vm1441, %v1553, 0.0
        %1555 = vadd.xlane.f32.xlu0 %v1554
        %v1556 = vpop.xlane.xlu0 %1555
        %v1557 = vadd.f32 %v1556, %v504
        %v1558 = vxor.u32 %v1557, 2147483648
        %v1559 = vmul.f32 %v1558, 1.442695
        %v1560 = vpow.pop %v1559
        %v1561 = vadd.f32 %v1560, 1.0
        %v1562 = vrcp.pop %v1561
        %v1563 = vmul.f32 %v1561, %v1562
        %v1564 = vsub.f32 1.0, %v1563
        %v1565 = vmul.f32 %v1562, %v1564
        %v1566 = vadd.f32 %v1562, %v1565
        %vm1567 = vweird.f32 %v1561
        %vm1568 = vweird.f32 %v1562
        %vm1569 = vmor %vm1567, %vm1568
        %v1570 = vsel %vm1569, %v1562, %v1566
        %v1571 = vand.u32 2147483647, %v1561
        %vm1572 = vcmp.eq.f32.partialorder %v1571, 8.507059e+37
        %v1573 = vand.u32 %v1561, 2147483648
        %v1574 = vor.u32 1.1754944e-38, %v1573
        %v1575 = vsel %vm1572, %v1574, %v1570
        %v1576 = vmul.f32 1.0, %v1575
        %vm1577 = vcmask 0
        %1578 = vst.msk [vmem:[%s495] sm:$0x1] %vm1577, %v1576
        %p1579 = scmp.lt.s32.totalorder %s33, 3
        %s1580 = scalar_select %p1579, %s33, 3
        %s1581 = scalar_lea.vmem %s8, %s1580
        %s1582 = sand.u32 %s245, 1
        %s1583 = scalar_lea.sflag [#allocation4], %s1582
        %s1584 = sand.u32 %s245, 1
        %s1585 = scalar_lea.vmem [#allocation16], %s1584
        // Predicated region
        $region85: #{transposable_bcell_forward.1} parent=51 // pred_check
          %p1586 = pneg %p229
        $region86: #{transposable_bcell_forward.1} parent=51 // pred_check_branch
          %1588 = sbr.rel (%p1586) target = $region88
        $region87: #{transposable_bcell_forward.1} parent=51 // pred_region
          _
        $region88: #{transposable_bcell_forward.1} parent=51 // pred_fallthru
          _
        // Predicated region
        $region89: #{transposable_bcell_forward.1} parent=51 // pred_check
          %p1589 = pneg %p255
        $region90: #{transposable_bcell_forward.1} parent=51 // pred_check_branch
          %1591 = sbr.rel (%p1589) target = $region92
        $region91: #{transposable_bcell_forward.1} parent=51 // pred_region
          %1593 = vsyncadd %s1583, 0
          %s1594 = scalar_lea.hbm %s9, %s33
          %s1596 = sshll.u32 %s1585, 4
          %s1597 = int_to_ptr.vmem [resolvable:$true] %s1596
          %s1598 = sshll.u32 %s1594, 4
          %s1599 = int_to_ptr.hbm [resolvable:$true] %s1598
          %1601 = dma.vmem_to_hbm [thread:$0]  %s1597, 16, %s1599, %s1583
        $region92: #{transposable_bcell_forward.1} parent=51 // pred_fallthru
          _
      $region52: #{transposable_bcell_forward.1} parent=5 // pred_fallthru
        _
      %p1602 = scmp.le.s32.totalorder 2, %s28
      // Predicated region
      $region93: #{transposable_bcell_forward.1} parent=5 // pred_check
        %p1603 = pneg %p1602
      $region94: #{transposable_bcell_forward.1} parent=5 // pred_check_branch
        %1605 = sbr.rel (%p1603) target = $region96
      $region95: #{transposable_bcell_forward.1} parent=5 // pred_region
        %s1606 = ssub.s32 %s28, 2
        // Predicated region
        $region97: #{transposable_bcell_forward.1} parent=95 // pred_check
          %p1607 = pneg %p235
        $region98: #{transposable_bcell_forward.1} parent=95 // pred_check_branch
          %1609 = sbr.rel (%p1607) target = $region100
        $region99: #{transposable_bcell_forward.1} parent=95 // pred_region
          %p1610 = scmp.lt.s32.totalorder %s34, 3
          %s1611 = scalar_select %p1610, %s34, 3
          %s1612 = scalar_lea.vmem %s8, %s1611
        $region100: #{transposable_bcell_forward.1} parent=95 // pred_fallthru
          _
        // Predicated region
        $region101: #{transposable_bcell_forward.1} parent=95 // pred_check
          %p1613 = pneg %p261
        $region102: #{transposable_bcell_forward.1} parent=95 // pred_check_branch
          %1615 = sbr.rel (%p1613) target = $region104
        $region103: #{transposable_bcell_forward.1} parent=95 // pred_region
          %s1616 = sand.u32 %s246, 1
          %s1617 = scalar_lea.sflag [#allocation4], %s1616
          %s1618 = sand.u32 %s246, 1
          %s1619 = scalar_lea.vmem [#allocation16], %s1618
          %1621 = dma.done %s1617, 16
        $region104: #{transposable_bcell_forward.1} parent=95 // pred_fallthru
          _
      $region96: #{transposable_bcell_forward.1} parent=5 // pred_fallthru
        _
    $region6: #{transposable_bcell_forward.1} parent=1 // loop_footer
      %s32 = sadd.s32 1, %s28
    $region7: #{transposable_bcell_forward.1} parent=1 // loop_footer_branch
      %27 = sbr.rel target = $region3
    $region8: #{transposable_bcell_forward.1} parent=1 // loop_exit
      _
    %1622 = vsyncpa [#allocation3], 1
    %s1623 = scalar_lea.sflag [#allocation3], 1
    %1624 = vsyncpa %s1623, 1
    %1625 = vsyncpa [#allocation6], 1
    %s1626 = scalar_lea.sflag [#allocation6], 1
    %1627 = vsyncpa %s1626, 1
    %1628 = vsyncpa [#allocation9], 1
    %1629 = vsyncpa [#allocation12], 1
    %1630 = vsyncpa [#allocation15], 1
    %1631 = vsyncpa [#allocation4], 1
    %s1632 = scalar_lea.sflag [#allocation4], 1
    %1633 = vsyncpa %s1632, 1

</llo_original>
